<compile_context>
chip_gen: v5e
topology: v5e:2x2
jax: 0.10.0
libtpu: 0.0.40
codegen_flags: <defaults>
</compile_context>

<pallas_src>
import functools

import numpy as np
import jax
import jax.numpy as jnp
from jax.experimental import pallas as pl
from jax.experimental.pallas import tpu as pltpu

# ----------------------------- hyper-params ---------------------------------
B = 2                       # batch
IMG_C, IMG_HW = 3, 14       # input image: (B, 3, 14, 14) NCHW
FEAT_C = 32                 # stands in for VGG's 512 feature channels
POOL_HW = 7                 # adaptive avg-pool output spatial size
N_SPATIAL = POOL_HW * POOL_HW               # 49
IN_FEAT = FEAT_C * N_SPATIAL                # 1568 (stands in for 512*7*7)
HIDDEN = 256                # stands in for 4096
N_CLS, N_CLS7, N_HKL = 230, 7, 5
N_HEADS = N_CLS + N_CLS7 + 3 * N_HKL        # 252 (all heads concatenated)
HEADS_PAD = 256             # lane-dense padded head width
ROWS_PAD = 8                # sublane-dense padded batch
KSIZE = 3
PATCH_K = KSIZE * KSIZE * IMG_C             # 27
PATCH_K_PAD = 32            # conv LHS K padded
CONV_ROWS = B * IMG_HW * IMG_HW             # 392 conv output positions
EMB_ROWS = 8                # each embedding vocab 5 padded to 8 rows
EMB_ALL_ROWS = 3 * EMB_ROWS                 # 24  (h | k | l stacked)

# w1 streaming: grid of K_STEPS steps, each covering GROUP_S spatial positions
K_STEPS = 7
GROUP_S = N_SPATIAL // K_STEPS              # 7 spatial positions per step
W1_BLK = GROUP_S * FEAT_C                   # 224 w1 rows per step
GROUP_ROWS = 16                             # 2*GROUP_S pooled rows padded to 16
POOL_ROWS_PAD = K_STEPS * GROUP_ROWS        # 112 pooled scratch rows


# ------------------------------ Pallas kernel --------------------------------
def fused_forward_kernel(idx_ref,                         # SMEM (3, B) int32 (scalar prefetch)
                         patches_ref, wconv_ref, bconv_ref, pool_ref,
                         w1_ref, b1_ref, w2_ref, b2_ref,
                         emb_ref, wh_ref, bh_ref,
                         out_ref,
                         pooled_scr, h1_scr):
    """conv(im2col matmul)+ReLU -> 2x2 avg-pool -> streamed Linear -> ReLU
    -> Linear -> ReLU -> sigmoid(h+k+l) gate -> all heads."""
    k = pl.program_id(0)

    # ---- step 0: synthetic backbone conv + 2x2 avg pool + accumulator init ---
    @pl.when(k == 0)
    def _front_end():
        conv = jnp.dot(patches_ref[...], wconv_ref[...],
                       preferred_element_type=jnp.float32)              # (392, 32)
        conv = jnp.maximum(conv + bconv_ref[...], 0.0)
        # 2x2 average pool as a matmul with a constant 0/0.25 matrix; pooled
        # row layout is group-padded: row = 16*py + 2*px + b  (rows 14,15 of
        # each 16-row group are zero padding) so later reads are 8-aligned.
        pooled_scr[...] = jnp.dot(pool_ref[...], conv.astype(jnp.bfloat16),
                                  preferred_element_type=jnp.float32)   # (112, 32)
        h1_scr[...] = jnp.zeros_like(h1_scr)

    # ---- every step: accumulate this step's K-slice of proj_linear[0] --------
    # Step k owns w1 rows [224k, 224k+224)  <->  spatial positions 7k .. 7k+6.
    row0 = pl.multiple_of(k * GROUP_ROWS, GROUP_ROWS)
    grp = pooled_scr[pl.ds(row0, GROUP_ROWS), :]                         # (16, 32) f32
    acc = jnp.zeros((B, HIDDEN), jnp.float32)
    for j in range(GROUP_S):                                             # static unroll (7)
        lhs = grp[2 * j:2 * j + 2, :].astype(jnp.bfloat16)               # (2, 32)
        acc = acc + jnp.dot(lhs, w1_ref[j * FEAT_C:(j + 1) * FEAT_C, :],
                            preferred_element_type=jnp.float32)          # (2, 256)
    h1_scr[...] = h1_scr[...] + jnp.concatenate(
        [acc, jnp.zeros((ROWS_PAD - B, HIDDEN), jnp.float32)], axis=0)   # dense store

    # ---- last step: bias+ReLU, second linear, position gate, all heads -------
    @pl.when(k == pl.num_programs(0) - 1)
    def _epilogue():
        h1 = jnp.maximum(h1_scr[...] + b1_ref[...], 0.0)                 # (8, 256)
        h2 = jnp.dot(h1.astype(jnp.bfloat16), w2_ref[...],
                     preferred_element_type=jnp.float32) + b2_ref[...]
        h2 = jnp.maximum(h2, 0.0)                                        # (8, 256)

        # position gate: sigmoid(emb_h[h] + emb_k[k] + emb_l[l]); one EUP pass
        rows = []
        for b in range(B):                                               # static unroll (2)
            e = (emb_ref[pl.ds(idx_ref[0, b], 1), :]
                 + emb_ref[pl.ds(idx_ref[1, b] + EMB_ROWS, 1), :]
                 + emb_ref[pl.ds(idx_ref[2, b] + 2 * EMB_ROWS, 1), :])   # (1, 256) f32
            rows.append(e)
        gate = jax.nn.sigmoid(jnp.concatenate(rows, axis=0))             # (2, 256)
        gate = jnp.concatenate(
            [gate, jnp.zeros((ROWS_PAD - B, HIDDEN), jnp.float32)], axis=0)

        fx = h2 * gate                                                   # (8, 256)
        # all heads (cls 230 | cls7 7 | h 5 | k 5 | l 5, zero-padded to 256)
        out_ref[...] = jnp.dot(fx.astype(jnp.bfloat16), wh_ref[...],
                               preferred_element_type=jnp.float32) + bh_ref[...]


# ------------------------------ pallas_call wrapper ---------------------------
def _const_spec(shape):
    # whole-array block, fetched once; index_map also gets the prefetch ref
    return pl.BlockSpec(shape, lambda k, idx_ref: (0, 0))


def fused_forward(params, patches, idx):
    return pl.pallas_call(
        fused_forward_kernel,
        out_shape=jax.ShapeDtypeStruct((ROWS_PAD, HEADS_PAD), jnp.float32),
        grid_spec=pltpu.PrefetchScalarGridSpec(
            num_scalar_prefetch=1,
            grid=(K_STEPS,),
            in_specs=[
                _const_spec((CONV_ROWS, PATCH_K_PAD)),        # im2col patches (bf16)
                _const_spec((PATCH_K_PAD, FEAT_C)),           # conv weight (bf16)
                _const_spec((1, FEAT_C)),                     # conv bias (f32)
                _const_spec((POOL_ROWS_PAD, CONV_ROWS)),      # pooling matrix (bf16)
                pl.BlockSpec((W1_BLK, HIDDEN),                # w1: STREAMED over grid
                             lambda k, idx_ref: (k, 0)),
                _const_spec((1, HIDDEN)),                     # b1 (f32)
                _const_spec((HIDDEN, HIDDEN)),                # w2 (bf16)
                _const_spec((1, HIDDEN)),                     # b2 (f32)
                _const_spec((EMB_ALL_ROWS, HIDDEN)),          # emb_h|emb_k|emb_l (f32)
                _const_spec((HIDDEN, HEADS_PAD)),             # concatenated head weights (bf16)
                _const_spec((1, HEADS_PAD)),                  # concatenated head biases (f32)
            ],
            out_specs=_const_spec((ROWS_PAD, HEADS_PAD)),
            scratch_shapes=[
                pltpu.VMEM((POOL_ROWS_PAD, FEAT_C), jnp.float32),   # pooled features
                pltpu.VMEM((ROWS_PAD, HIDDEN), jnp.float32),        # h1 accumulator
            ],
        ),
        # the single grid axis is a reduction over w1's K dimension
        compiler_params=pltpu.CompilerParams(dimension_semantics=("arbitrary",)),
    )(idx, patches, params["w_conv"], params["b_conv"], params["pool_mat"],
      params["w1"], params["b1"], params["w2"], params["b2"],
      params["emb_all"], params["w_heads"], params["b_heads"])


# ------------------------------ model forward --------------------------------
def hkl_forward(params, x_nchw, h_idx, k_idx, l_idx):
    # TODO(synk): the external VGG backbone `self.model` is replaced by a small
    # synthetic stand-in (3x3 conv + ReLU + adaptive avg-pool to 7x7); im2col
    # patch extraction stays a single fused XLA op outside the kernel.
    x = jnp.transpose(x_nchw, (0, 2, 3, 1))                        # NCHW -> NHWC
    xp = jnp.pad(x, ((0, 0), (1, 1), (1, 1), (0, 0)))              # pad=1
    cols = [xp[:, dy:dy + IMG_HW, dx:dx + IMG_HW, :]
            for dy in range(KSIZE) for dx in range(KSIZE)]
    patches = jnp.concatenate(cols, axis=-1).reshape(CONV_ROWS, PATCH_K)
    patches = jnp.pad(patches, ((0, 0), (0, PATCH_K_PAD - PATCH_K)))
    patches = patches.astype(jnp.bfloat16)

    idx = jnp.stack([h_idx, k_idx, l_idx], axis=0).astype(jnp.int32)   # (3, B)

    out = fused_forward(params, patches, idx)        # (8, 256) padded block

    c0 = N_CLS
    c1 = c0 + N_CLS7
    c2 = c1 + N_HKL
    c3 = c2 + N_HKL
    return (out[:B, :c0], out[:B, c0:c1], out[:B, c1:c2],
            out[:B, c2:c3], out[:B, c3:N_HEADS])


# ------------------------------ pure-JAX reference ----------------------------
def reference_forward(ref, x_nchw, h_idx, k_idx, l_idx):
    """f32 reference of the same synthetic model (no bf16 rounding)."""
    x = jnp.transpose(x_nchw, (0, 2, 3, 1))
    xp = jnp.pad(x, ((0, 0), (1, 1), (1, 1), (0, 0)))
    cols = [xp[:, dy:dy + IMG_HW, dx:dx + IMG_HW, :]
            for dy in range(KSIZE) for dx in range(KSIZE)]
    patches = jnp.concatenate(cols, axis=-1)                         # (B,14,14,27)
    conv = jnp.maximum(
        jnp.einsum("byxk,kc->byxc", patches, ref["w_conv"]) + ref["b_conv"][0], 0.0)
    pooled = conv.reshape(B, POOL_HW, 2, POOL_HW, 2, FEAT_C).mean(axis=(2, 4))
    feat = jnp.transpose(pooled, (0, 3, 1, 2)).reshape(B, IN_FEAT)   # torch NCHW flatten
    h1 = jnp.maximum(feat @ ref["w1"] + ref["b1"][0], 0.0)
    h2 = jnp.maximum(h1 @ ref["w2"] + ref["b2"][0], 0.0)
    gate = jax.nn.sigmoid(ref["emb_h"][h_idx] + ref["emb_k"][k_idx] + ref["emb_l"][l_idx])
    fx = h2 * gate
    return fx @ ref["w_heads"] + ref["b_heads"][0]                   # (B, 252)


# ------------------------------ param init -----------------------------------
def _pooling_matrix():
    """(112, 392): pooled[16*py + 2*px + b, :] = mean of the 2x2 conv window."""
    P = np.zeros((POOL_ROWS_PAD, CONV_ROWS), np.float32)
    for py in range(POOL_HW):
        for px in range(POOL_HW):
            for b in range(B):
                p = py * GROUP_ROWS + 2 * px + b
                for i in range(2):
                    for j in range(2):
                        r = b * IMG_HW * IMG_HW + (2 * py + i) * IMG_HW + (2 * px + j)
                        P[p, r] = 0.25
    return jnp.asarray(P, jnp.bfloat16)


def init_params(key):
    ks = jax.random.split(key, 10)

    def nrm(k, shape, scale=0.05):
        return jax.random.normal(k, shape, jnp.float32) * scale

    # canonical ("torch-like") parameters
    w_conv = nrm(ks[0], (PATCH_K, FEAT_C))
    b_conv = nrm(ks[1], (1, FEAT_C))
    w1 = nrm(ks[2], (IN_FEAT, HIDDEN))              # rows in torch NCHW-flatten order
    b1 = nrm(ks[3], (1, HIDDEN))
    w2 = nrm(ks[4], (HIDDEN, HIDDEN))
    b2 = nrm(ks[5], (1, HIDDEN))
    emb_h = nrm(ks[6], (5, HIDDEN))
    emb_k = nrm(ks[7], (5, HIDDEN))
    emb_l = nrm(ks[8], (5, HIDDEN))
    w_heads = nrm(ks[9], (HIDDEN, N_HEADS))         # cls|cls7|h|k|l concatenated
    b_heads = jnp.zeros((1, N_HEADS), jnp.float32)

    ref = dict(w_conv=w_conv, b_conv=b_conv, w1=w1, b1=b1, w2=w2, b2=b2,
               emb_h=emb_h, emb_k=emb_k, emb_l=emb_l,
               w_heads=w_heads, b_heads=b_heads)

    # ---- one-time layout / dtype plumbing (zero runtime cost) ----------------
    # permute w1 rows (c*49+s -> s*32+c) so it consumes NHWC-ordered features.
    w1_nhwc = (w1.reshape(FEAT_C, N_SPATIAL, HIDDEN)
                 .transpose(1, 0, 2).reshape(IN_FEAT, HIDDEN))
    emb_all = jnp.concatenate(
        [jnp.pad(e, ((0, EMB_ROWS - 5), (0, 0))) for e in (emb_h, emb_k, emb_l)],
        axis=0)                                                     # (24, 256) f32

    params = {
        "w_conv": jnp.pad(w_conv, ((0, PATCH_K_PAD - PATCH_K), (0, 0))).astype(jnp.bfloat16),
        "b_conv": b_conv,
        "pool_mat": _pooling_matrix(),
        "w1": w1_nhwc.astype(jnp.bfloat16),
        "b1": b1,
        "w2": w2.astype(jnp.bfloat16),
        "b2": b2,
        "emb_all": emb_all,
        "w_heads": jnp.pad(w_heads, ((0, 0), (0, HEADS_PAD - N_HEADS))).astype(jnp.bfloat16),
        "b_heads": jnp.pad(b_heads, ((0, 0), (0, HEADS_PAD - N_HEADS))),
    }
    return params, ref


# ------------------------------ main ------------------------------------------
if __name__ == "__main__":
    root = jax.random.PRNGKey(0)
    kp, kx, kh, kk, kl = jax.random.split(root, 5)

    params, ref = init_params(kp)
    x = jax.random.normal(kx, (B, IMG_C, IMG_HW, IMG_HW), jnp.float32)  # NCHW
    h_idx = jax.random.randint(kh, (B,), 0, 5)
    k_idx = jax.random.randint(kk, (B,), 0, 5)
    l_idx = jax.random.randint(kl, (B,), 0, 5)

    fwd = jax.jit(functools.partial(hkl_forward, params))
    outs = jax.block_until_ready(fwd(x, h_idx, k_idx, l_idx))

    expected = [(B, N_CLS), (B, N_CLS7), (B, N_HKL), (B, N_HKL), (B, N_HKL)]
    assert [o.shape for o in outs] == expected, [o.shape for o in outs]
    assert all(bool(jnp.all(jnp.isfinite(o))) for o in outs)

    # numerical check vs a pure-f32 JAX reference (bf16 weights => loose tol)
    ref_out = reference_forward(ref, x, h_idx, k_idx, l_idx)            # (B, 252)
    got = jnp.concatenate(outs, axis=1)                                 # (B, 252)
    err = float(jnp.max(jnp.abs(got - ref_out)))
    scale = float(jnp.max(jnp.abs(ref_out))) + 1e-6
    assert err / scale < 0.05, ("kernel/reference mismatch", err, scale)

    print("KERNEL_OK")
</pallas_src>

<mosaic_0001>
module attributes {stable_mosaic.version = 11 : i64} {
  func.func @fused_forward_kernel(%arg0: i32, %arg1: memref<3x2xi32, #tpu.memory_space<smem>>, %arg2: memref<392x32xbf16, #tpu.memory_space<vmem>>, %arg3: memref<32x32xbf16, #tpu.memory_space<vmem>>, %arg4: memref<1x32xf32, #tpu.memory_space<vmem>>, %arg5: memref<112x392xbf16, #tpu.memory_space<vmem>>, %arg6: memref<224x256xbf16, #tpu.memory_space<vmem>>, %arg7: memref<1x256xf32, #tpu.memory_space<vmem>>, %arg8: memref<256x256xbf16, #tpu.memory_space<vmem>>, %arg9: memref<1x256xf32, #tpu.memory_space<vmem>>, %arg10: memref<24x256xf32, #tpu.memory_space<vmem>>, %arg11: memref<256x256xbf16, #tpu.memory_space<vmem>>, %arg12: memref<1x256xf32, #tpu.memory_space<vmem>>, %arg13: memref<8x256xf32, #tpu.memory_space<vmem>>, %arg14: memref<112x32xf32, #tpu.memory_space<vmem>>, %arg15: memref<8x256xf32, #tpu.memory_space<vmem>>) attributes {dimension_semantics = [#tpu.dimension_semantics<arbitrary>], iteration_bounds = array<i64: 7>, scalar_prefetch = 1 : i64, scratch_operands = 2 : i64, tpu.core_type = #tpu.core_type<tc>, window_params = [{pipeline_mode = #tpu.pipeline_mode<synchronous>, transform_indices = @transform_0, window_bounds = array<i64: 392, 32>}, {pipeline_mode = #tpu.pipeline_mode<synchronous>, transform_indices = @transform_1, window_bounds = array<i64: 32, 32>}, {pipeline_mode = #tpu.pipeline_mode<synchronous>, transform_indices = @transform_2, window_bounds = array<i64: 1, 32>}, {pipeline_mode = #tpu.pipeline_mode<synchronous>, transform_indices = @transform_3, window_bounds = array<i64: 112, 392>}, {transform_indices = @transform_4, window_bounds = array<i64: 224, 256>}, {pipeline_mode = #tpu.pipeline_mode<synchronous>, transform_indices = @transform_5, window_bounds = array<i64: 1, 256>}, {pipeline_mode = #tpu.pipeline_mode<synchronous>, transform_indices = @transform_6, window_bounds = array<i64: 256, 256>}, {pipeline_mode = #tpu.pipeline_mode<synchronous>, transform_indices = @transform_7, window_bounds = array<i64: 1, 256>}, {pipeline_mode = #tpu.pipeline_mode<synchronous>, transform_indices = @transform_8, window_bounds = array<i64: 24, 256>}, {pipeline_mode = #tpu.pipeline_mode<synchronous>, transform_indices = @transform_9, window_bounds = array<i64: 256, 256>}, {pipeline_mode = #tpu.pipeline_mode<synchronous>, transform_indices = @transform_10, window_bounds = array<i64: 1, 256>}, {pipeline_mode = #tpu.pipeline_mode<synchronous>, transform_indices = @transform_11, window_bounds = array<i64: 8, 256>}]} {
    %c0_i32 = arith.constant 0 : i32
    %0 = arith.cmpi eq, %arg0, %c0_i32 : i32
    %1 = arith.extui %0 : i1 to i32
    %c0_i32_0 = arith.constant 0 : i32
    %2 = arith.cmpi ne, %1, %c0_i32_0 : i32
    scf.if %2 {
      %c0_22 = arith.constant 0 : index
      %c0_23 = arith.constant 0 : index
      %51 = vector.load %arg2[%c0_22, %c0_23] : memref<392x32xbf16, #tpu.memory_space<vmem>>, vector<392x32xbf16>
      %c0_24 = arith.constant 0 : index
      %c0_25 = arith.constant 0 : index
      %52 = vector.load %arg3[%c0_24, %c0_25] : memref<32x32xbf16, #tpu.memory_space<vmem>>, vector<32x32xbf16>
      %cst_26 = arith.constant dense<0.000000e+00> : vector<392x32xf32>
      %53 = tpu.matmul %51, %52, %cst_26 {dimension_numbers = #tpu.dot_dimension_numbers<[1], [0], [0], [1], [0, 0, 1, 1], [], []>} : vector<392x32xbf16>, vector<32x32xbf16>, vector<392x32xf32> -> vector<392x32xf32>
      %c0_27 = arith.constant 0 : index
      %c0_28 = arith.constant 0 : index
      %54 = vector.load %arg4[%c0_27, %c0_28] : memref<1x32xf32, #tpu.memory_space<vmem>>, vector<1x32xf32>
      %55 = vector.broadcast %54 : vector<1x32xf32> to vector<392x32xf32>
      %56 = arith.addf %53, %55 : vector<392x32xf32>
      %cst_29 = arith.constant 0.000000e+00 : f32
      %57 = vector.broadcast %cst_29 : f32 to vector<392x32xf32>
      %58 = arith.maximumf %56, %57 : vector<392x32xf32>
      %c0_30 = arith.constant 0 : index
      %c0_31 = arith.constant 0 : index
      %59 = vector.load %arg5[%c0_30, %c0_31] : memref<112x392xbf16, #tpu.memory_space<vmem>>, vector<112x392xbf16>
      %60 = arith.truncf %58 : vector<392x32xf32> to vector<392x32xbf16>
      %cst_32 = arith.constant dense<0.000000e+00> : vector<112x32xf32>
      %61 = tpu.matmul %59, %60, %cst_32 {dimension_numbers = #tpu.dot_dimension_numbers<[1], [0], [0], [1], [0, 0, 1, 1], [], []>} : vector<112x392xbf16>, vector<392x32xbf16>, vector<112x32xf32> -> vector<112x32xf32>
      %c0_33 = arith.constant 0 : index
      %c0_34 = arith.constant 0 : index
      %62 = vector.load %arg14[%c0_33, %c0_34] : memref<112x32xf32, #tpu.memory_space<vmem>>, vector<112x32xf32>
      tpu.vector_store %arg14[%c0_33, %c0_34], %61 {strides = array<i32>} : memref<112x32xf32, #tpu.memory_space<vmem>>, vector<112x32xf32>,
      %cst_35 = arith.constant 0.000000e+00 : f32
      %63 = vector.broadcast %cst_35 : f32 to vector<8x256xf32>
      %c0_36 = arith.constant 0 : index
      %c0_37 = arith.constant 0 : index
      %64 = vector.load %arg15[%c0_36, %c0_37] : memref<8x256xf32, #tpu.memory_space<vmem>>, vector<8x256xf32>
      tpu.vector_store %arg15[%c0_36, %c0_37], %63 {strides = array<i32>} : memref<8x256xf32, #tpu.memory_space<vmem>>, vector<8x256xf32>,
    } else {
    }
    %c16_i32 = arith.constant 16 : i32
    %3 = arith.muli %arg0, %c16_i32 : i32
    %4 = tpu.assume_multiple %3, 16 : i32
    %5 = arith.index_cast %4 : i32 to index
    %c0 = arith.constant 0 : index
    %6 = vector.load %arg14[%5, %c0] : memref<112x32xf32, #tpu.memory_space<vmem>>, vector<16x32xf32>
    %cst = arith.constant 0.000000e+00 : f32
    %7 = vector.broadcast %cst : f32 to vector<2x256xf32>
    %8 = vector.extract_strided_slice %6 {offsets = [0, 0], sizes = [2, 32], strides = [1, 1]} : vector<16x32xf32> to vector<2x32xf32>
    %9 = arith.truncf %8 : vector<2x32xf32> to vector<2x32xbf16>
    %c0_1 = arith.constant 0 : index
    %c0_2 = arith.constant 0 : index
    %10 = vector.load %arg6[%c0_1, %c0_2] : memref<224x256xbf16, #tpu.memory_space<vmem>>, vector<32x256xbf16>
    %cst_3 = arith.constant dense<0.000000e+00> : vector<2x256xf32>
    %11 = tpu.matmul %9, %10, %cst_3 {dimension_numbers = #tpu.dot_dimension_numbers<[1], [0], [0], [1], [0, 0, 1, 1], [], []>} : vector<2x32xbf16>, vector<32x256xbf16>, vector<2x256xf32> -> vector<2x256xf32>
    %12 = arith.addf %7, %11 : vector<2x256xf32>
    %13 = vector.extract_strided_slice %6 {offsets = [2, 0], sizes = [2, 32], strides = [1, 1]} : vector<16x32xf32> to vector<2x32xf32>
    %14 = arith.truncf %13 : vector<2x32xf32> to vector<2x32xbf16>
    %c32 = arith.constant 32 : index
    %c0_4 = arith.constant 0 : index
    %15 = vector.load %arg6[%c32, %c0_4] : memref<224x256xbf16, #tpu.memory_space<vmem>>, vector<32x256xbf16>
    %cst_5 = arith.constant dense<0.000000e+00> : vector<2x256xf32>
    %16 = tpu.matmul %14, %15, %cst_5 {dimension_numbers = #tpu.dot_dimension_numbers<[1], [0], [0], [1], [0, 0, 1, 1], [], []>} : vector<2x32xbf16>, vector<32x256xbf16>, vector<2x256xf32> -> vector<2x256xf32>
    %17 = arith.addf %12, %16 : vector<2x256xf32>
    %18 = vector.extract_strided_slice %6 {offsets = [4, 0], sizes = [2, 32], strides = [1, 1]} : vector<16x32xf32> to vector<2x32xf32>
    %19 = arith.truncf %18 : vector<2x32xf32> to vector<2x32xbf16>
    %c64 = arith.constant 64 : index
    %c0_6 = arith.constant 0 : index
    %20 = vector.load %arg6[%c64, %c0_6] : memref<224x256xbf16, #tpu.memory_space<vmem>>, vector<32x256xbf16>
    %cst_7 = arith.constant dense<0.000000e+00> : vector<2x256xf32>
    %21 = tpu.matmul %19, %20, %cst_7 {dimension_numbers = #tpu.dot_dimension_numbers<[1], [0], [0], [1], [0, 0, 1, 1], [], []>} : vector<2x32xbf16>, vector<32x256xbf16>, vector<2x256xf32> -> vector<2x256xf32>
    %22 = arith.addf %17, %21 : vector<2x256xf32>
    %23 = vector.extract_strided_slice %6 {offsets = [6, 0], sizes = [2, 32], strides = [1, 1]} : vector<16x32xf32> to vector<2x32xf32>
    %24 = arith.truncf %23 : vector<2x32xf32> to vector<2x32xbf16>
    %c96 = arith.constant 96 : index
    %c0_8 = arith.constant 0 : index
    %25 = vector.load %arg6[%c96, %c0_8] : memref<224x256xbf16, #tpu.memory_space<vmem>>, vector<32x256xbf16>
    %cst_9 = arith.constant dense<0.000000e+00> : vector<2x256xf32>
    %26 = tpu.matmul %24, %25, %cst_9 {dimension_numbers = #tpu.dot_dimension_numbers<[1], [0], [0], [1], [0, 0, 1, 1], [], []>} : vector<2x32xbf16>, vector<32x256xbf16>, vector<2x256xf32> -> vector<2x256xf32>
    %27 = arith.addf %22, %26 : vector<2x256xf32>
    %28 = vector.extract_strided_slice %6 {offsets = [8, 0], sizes = [2, 32], strides = [1, 1]} : vector<16x32xf32> to vector<2x32xf32>
    %29 = arith.truncf %28 : vector<2x32xf32> to vector<2x32xbf16>
    %c128 = arith.constant 128 : index
    %c0_10 = arith.constant 0 : index
    %30 = vector.load %arg6[%c128, %c0_10] : memref<224x256xbf16, #tpu.memory_space<vmem>>, vector<32x256xbf16>
    %cst_11 = arith.constant dense<0.000000e+00> : vector<2x256xf32>
    %31 = tpu.matmul %29, %30, %cst_11 {dimension_numbers = #tpu.dot_dimension_numbers<[1], [0], [0], [1], [0, 0, 1, 1], [], []>} : vector<2x32xbf16>, vector<32x256xbf16>, vector<2x256xf32> -> vector<2x256xf32>
    %32 = arith.addf %27, %31 : vector<2x256xf32>
    %33 = vector.extract_strided_slice %6 {offsets = [10, 0], sizes = [2, 32], strides = [1, 1]} : vector<16x32xf32> to vector<2x32xf32>
    %34 = arith.truncf %33 : vector<2x32xf32> to vector<2x32xbf16>
    %c160 = arith.constant 160 : index
    %c0_12 = arith.constant 0 : index
    %35 = vector.load %arg6[%c160, %c0_12] : memref<224x256xbf16, #tpu.memory_space<vmem>>, vector<32x256xbf16>
    %cst_13 = arith.constant dense<0.000000e+00> : vector<2x256xf32>
    %36 = tpu.matmul %34, %35, %cst_13 {dimension_numbers = #tpu.dot_dimension_numbers<[1], [0], [0], [1], [0, 0, 1, 1], [], []>} : vector<2x32xbf16>, vector<32x256xbf16>, vector<2x256xf32> -> vector<2x256xf32>
    %37 = arith.addf %32, %36 : vector<2x256xf32>
    %38 = vector.extract_strided_slice %6 {offsets = [12, 0], sizes = [2, 32], strides = [1, 1]} : vector<16x32xf32> to vector<2x32xf32>
    %39 = arith.truncf %38 : vector<2x32xf32> to vector<2x32xbf16>
    %c192 = arith.constant 192 : index
    %c0_14 = arith.constant 0 : index
    %40 = vector.load %arg6[%c192, %c0_14] : memref<224x256xbf16, #tpu.memory_space<vmem>>, vector<32x256xbf16>
    %cst_15 = arith.constant dense<0.000000e+00> : vector<2x256xf32>
    %41 = tpu.matmul %39, %40, %cst_15 {dimension_numbers = #tpu.dot_dimension_numbers<[1], [0], [0], [1], [0, 0, 1, 1], [], []>} : vector<2x32xbf16>, vector<32x256xbf16>, vector<2x256xf32> -> vector<2x256xf32>
    %42 = arith.addf %37, %41 : vector<2x256xf32>
    %c0_16 = arith.constant 0 : index
    %c0_17 = arith.constant 0 : index
    %43 = vector.load %arg15[%c0_16, %c0_17] : memref<8x256xf32, #tpu.memory_space<vmem>>, vector<8x256xf32>
    %cst_18 = arith.constant 0.000000e+00 : f32
    %44 = vector.broadcast %cst_18 : f32 to vector<6x256xf32>
    %45 = tpu.concatenate %42, %44 in 0 : vector<2x256xf32>, vector<6x256xf32> -> vector<8x256xf32>
    %46 = arith.addf %43, %45 : vector<8x256xf32>
    %c0_19 = arith.constant 0 : index
    %c0_20 = arith.constant 0 : index
    %47 = vector.load %arg15[%c0_19, %c0_20] : memref<8x256xf32, #tpu.memory_space<vmem>>, vector<8x256xf32>
    tpu.vector_store %arg15[%c0_19, %c0_20], %46 {strides = array<i32>} : memref<8x256xf32, #tpu.memory_space<vmem>>, vector<8x256xf32>,
    %c6_i32 = arith.constant 6 : i32
    %48 = arith.cmpi eq, %arg0, %c6_i32 : i32
    %49 = arith.extui %48 : i1 to i32
    %c0_i32_21 = arith.constant 0 : i32
    %50 = arith.cmpi ne, %49, %c0_i32_21 : i32
    scf.if %50 {
      %c0_22 = arith.constant 0 : index
      %c0_23 = arith.constant 0 : index
      %51 = vector.load %arg15[%c0_22, %c0_23] : memref<8x256xf32, #tpu.memory_space<vmem>>, vector<8x256xf32>
      %c0_24 = arith.constant 0 : index
      %c0_25 = arith.constant 0 : index
      %52 = vector.load %arg7[%c0_24, %c0_25] : memref<1x256xf32, #tpu.memory_space<vmem>>, vector<1x256xf32>
      %53 = vector.broadcast %52 : vector<1x256xf32> to vector<8x256xf32>
      %54 = arith.addf %51, %53 : vector<8x256xf32>
      %cst_26 = arith.constant 0.000000e+00 : f32
      %55 = vector.broadcast %cst_26 : f32 to vector<8x256xf32>
      %56 = arith.maximumf %54, %55 : vector<8x256xf32>
      %57 = arith.truncf %56 : vector<8x256xf32> to vector<8x256xbf16>
      %c0_27 = arith.constant 0 : index
      %c0_28 = arith.constant 0 : index
      %58 = vector.load %arg8[%c0_27, %c0_28] : memref<256x256xbf16, #tpu.memory_space<vmem>>, vector<256x256xbf16>
      %cst_29 = arith.constant dense<0.000000e+00> : vector<8x256xf32>
      %59 = tpu.matmul %57, %58, %cst_29 {dimension_numbers = #tpu.dot_dimension_numbers<[1], [0], [0], [1], [0, 0, 1, 1], [], []>} : vector<8x256xbf16>, vector<256x256xbf16>, vector<8x256xf32> -> vector<8x256xf32>
      %c0_30 = arith.constant 0 : index
      %c0_31 = arith.constant 0 : index
      %60 = vector.load %arg9[%c0_30, %c0_31] : memref<1x256xf32, #tpu.memory_space<vmem>>, vector<1x256xf32>
      %61 = vector.broadcast %60 : vector<1x256xf32> to vector<8x256xf32>
      %62 = arith.addf %59, %61 : vector<8x256xf32>
      %cst_32 = arith.constant 0.000000e+00 : f32
      %63 = vector.broadcast %cst_32 : f32 to vector<8x256xf32>
      %64 = arith.maximumf %62, %63 : vector<8x256xf32>
      %c0_33 = arith.constant 0 : index
      %c0_34 = arith.constant 0 : index
      %65 = memref.load %arg1[%c0_33, %c0_34] : memref<3x2xi32, #tpu.memory_space<smem>>
      %66 = arith.index_cast %65 : i32 to index
      %c0_35 = arith.constant 0 : index
      %67 = vector.load %arg10[%66, %c0_35] : memref<24x256xf32, #tpu.memory_space<vmem>>, vector<1x256xf32>
      %c1 = arith.constant 1 : index
      %c0_36 = arith.constant 0 : index
      %68 = memref.load %arg1[%c1, %c0_36] : memref<3x2xi32, #tpu.memory_space<smem>>
      %c8_i32 = arith.constant 8 : i32
      %69 = arith.addi %68, %c8_i32 : i32
      %70 = arith.index_cast %69 : i32 to index
      %c0_37 = arith.constant 0 : index
      %71 = vector.load %arg10[%70, %c0_37] : memref<24x256xf32, #tpu.memory_space<vmem>>, vector<1x256xf32>
      %72 = arith.addf %67, %71 : vector<1x256xf32>
      %c2 = arith.constant 2 : index
      %c0_38 = arith.constant 0 : index
      %73 = memref.load %arg1[%c2, %c0_38] : memref<3x2xi32, #tpu.memory_space<smem>>
      %c16_i32_39 = arith.constant 16 : i32
      %74 = arith.addi %73, %c16_i32_39 : i32
      %75 = arith.index_cast %74 : i32 to index
      %c0_40 = arith.constant 0 : index
      %76 = vector.load %arg10[%75, %c0_40] : memref<24x256xf32, #tpu.memory_space<vmem>>, vector<1x256xf32>
      %77 = arith.addf %72, %76 : vector<1x256xf32>
      %c0_41 = arith.constant 0 : index
      %c1_42 = arith.constant 1 : index
      %78 = memref.load %arg1[%c0_41, %c1_42] : memref<3x2xi32, #tpu.memory_space<smem>>
      %79 = arith.index_cast %78 : i32 to index
      %c0_43 = arith.constant 0 : index
      %80 = vector.load %arg10[%79, %c0_43] : memref<24x256xf32, #tpu.memory_space<vmem>>, vector<1x256xf32>
      %c1_44 = arith.constant 1 : index
      %c1_45 = arith.constant 1 : index
      %81 = memref.load %arg1[%c1_44, %c1_45] : memref<3x2xi32, #tpu.memory_space<smem>>
      %c8_i32_46 = arith.constant 8 : i32
      %82 = arith.addi %81, %c8_i32_46 : i32
      %83 = arith.index_cast %82 : i32 to index
      %c0_47 = arith.constant 0 : index
      %84 = vector.load %arg10[%83, %c0_47] : memref<24x256xf32, #tpu.memory_space<vmem>>, vector<1x256xf32>
      %85 = arith.addf %80, %84 : vector<1x256xf32>
      %c2_48 = arith.constant 2 : index
      %c1_49 = arith.constant 1 : index
      %86 = memref.load %arg1[%c2_48, %c1_49] : memref<3x2xi32, #tpu.memory_space<smem>>
      %c16_i32_50 = arith.constant 16 : i32
      %87 = arith.addi %86, %c16_i32_50 : i32
      %88 = arith.index_cast %87 : i32 to index
      %c0_51 = arith.constant 0 : index
      %89 = vector.load %arg10[%88, %c0_51] : memref<24x256xf32, #tpu.memory_space<vmem>>, vector<1x256xf32>
      %90 = arith.addf %85, %89 : vector<1x256xf32>
      %91 = tpu.concatenate %77, %90 in 0 : vector<1x256xf32>, vector<1x256xf32> -> vector<2x256xf32>
      %92 = arith.negf %91 : vector<2x256xf32>
      %93 = math.exp %92 : vector<2x256xf32>
      %cst_52 = arith.constant 1.000000e+00 : f32
      %94 = vector.broadcast %cst_52 : f32 to vector<2x256xf32>
      %95 = arith.addf %94, %93 : vector<2x256xf32>
      %96 = arith.divf %94, %95 : vector<2x256xf32>
      %cst_53 = arith.constant 0.000000e+00 : f32
      %97 = vector.broadcast %cst_53 : f32 to vector<6x256xf32>
      %98 = tpu.concatenate %96, %97 in 0 : vector<2x256xf32>, vector<6x256xf32> -> vector<8x256xf32>
      %99 = arith.mulf %64, %98 : vector<8x256xf32>
      %100 = arith.truncf %99 : vector<8x256xf32> to vector<8x256xbf16>
      %c0_54 = arith.constant 0 : index
      %c0_55 = arith.constant 0 : index
      %101 = vector.load %arg11[%c0_54, %c0_55] : memref<256x256xbf16, #tpu.memory_space<vmem>>, vector<256x256xbf16>
      %cst_56 = arith.constant dense<0.000000e+00> : vector<8x256xf32>
      %102 = tpu.matmul %100, %101, %cst_56 {dimension_numbers = #tpu.dot_dimension_numbers<[1], [0], [0], [1], [0, 0, 1, 1], [], []>} : vector<8x256xbf16>, vector<256x256xbf16>, vector<8x256xf32> -> vector<8x256xf32>
      %c0_57 = arith.constant 0 : index
      %c0_58 = arith.constant 0 : index
      %103 = vector.load %arg12[%c0_57, %c0_58] : memref<1x256xf32, #tpu.memory_space<vmem>>, vector<1x256xf32>
      %104 = vector.broadcast %103 : vector<1x256xf32> to vector<8x256xf32>
      %105 = arith.addf %102, %104 : vector<8x256xf32>
      %c0_59 = arith.constant 0 : index
      %c0_60 = arith.constant 0 : index
      %106 = vector.load %arg13[%c0_59, %c0_60] : memref<8x256xf32, #tpu.memory_space<vmem>>, vector<8x256xf32>
      tpu.vector_store %arg13[%c0_59, %c0_60], %105 {strides = array<i32>} : memref<8x256xf32, #tpu.memory_space<vmem>>, vector<8x256xf32>,
    } else {
    }
    return
  }
  func.func @transform_0(%arg0: i32, %arg1: memref<3x2xi32, #tpu.memory_space<smem>>) -> (i32, i32) {
    %c0_i32 = arith.constant 0 : i32
    %c0_i32_0 = arith.constant 0 : i32
    %c0_i32_1 = arith.constant 0 : i32
    return %c0_i32, %c0_i32_0 : i32, i32
  }
  func.func @transform_1(%arg0: i32, %arg1: memref<3x2xi32, #tpu.memory_space<smem>>) -> (i32, i32) {
    %c0_i32 = arith.constant 0 : i32
    %c0_i32_0 = arith.constant 0 : i32
    %c0_i32_1 = arith.constant 0 : i32
    return %c0_i32, %c0_i32_0 : i32, i32
  }
  func.func @transform_2(%arg0: i32, %arg1: memref<3x2xi32, #tpu.memory_space<smem>>) -> (i32, i32) {
    %c0_i32 = arith.constant 0 : i32
    %c0_i32_0 = arith.constant 0 : i32
    %c0_i32_1 = arith.constant 0 : i32
    return %c0_i32, %c0_i32_0 : i32, i32
  }
  func.func @transform_3(%arg0: i32, %arg1: memref<3x2xi32, #tpu.memory_space<smem>>) -> (i32, i32) {
    %c0_i32 = arith.constant 0 : i32
    %c0_i32_0 = arith.constant 0 : i32
    %c0_i32_1 = arith.constant 0 : i32
    return %c0_i32, %c0_i32_0 : i32, i32
  }
  func.func @transform_4(%arg0: i32, %arg1: memref<3x2xi32, #tpu.memory_space<smem>>) -> (i32, i32) {
    %c0_i32 = arith.constant 0 : i32
    %c0_i32_0 = arith.constant 0 : i32
    return %arg0, %c0_i32 : i32, i32
  }
  func.func @transform_5(%arg0: i32, %arg1: memref<3x2xi32, #tpu.memory_space<smem>>) -> (i32, i32) {
    %c0_i32 = arith.constant 0 : i32
    %c0_i32_0 = arith.constant 0 : i32
    %c0_i32_1 = arith.constant 0 : i32
    return %c0_i32, %c0_i32_0 : i32, i32
  }
  func.func @transform_6(%arg0: i32, %arg1: memref<3x2xi32, #tpu.memory_space<smem>>) -> (i32, i32) {
    %c0_i32 = arith.constant 0 : i32
    %c0_i32_0 = arith.constant 0 : i32
    %c0_i32_1 = arith.constant 0 : i32
    return %c0_i32, %c0_i32_0 : i32, i32
  }
  func.func @transform_7(%arg0: i32, %arg1: memref<3x2xi32, #tpu.memory_space<smem>>) -> (i32, i32) {
    %c0_i32 = arith.constant 0 : i32
    %c0_i32_0 = arith.constant 0 : i32
    %c0_i32_1 = arith.constant 0 : i32
    return %c0_i32, %c0_i32_0 : i32, i32
  }
  func.func @transform_8(%arg0: i32, %arg1: memref<3x2xi32, #tpu.memory_space<smem>>) -> (i32, i32) {
    %c0_i32 = arith.constant 0 : i32
    %c0_i32_0 = arith.constant 0 : i32
    %c0_i32_1 = arith.constant 0 : i32
    return %c0_i32, %c0_i32_0 : i32, i32
  }
  func.func @transform_9(%arg0: i32, %arg1: memref<3x2xi32, #tpu.memory_space<smem>>) -> (i32, i32) {
    %c0_i32 = arith.constant 0 : i32
    %c0_i32_0 = arith.constant 0 : i32
    %c0_i32_1 = arith.constant 0 : i32
    return %c0_i32, %c0_i32_0 : i32, i32
  }
  func.func @transform_10(%arg0: i32, %arg1: memref<3x2xi32, #tpu.memory_space<smem>>) -> (i32, i32) {
    %c0_i32 = arith.constant 0 : i32
    %c0_i32_0 = arith.constant 0 : i32
    %c0_i32_1 = arith.constant 0 : i32
    return %c0_i32, %c0_i32_0 : i32, i32
  }
  func.func @transform_11(%arg0: i32, %arg1: memref<3x2xi32, #tpu.memory_space<smem>>) -> (i32, i32) {
    %c0_i32 = arith.constant 0 : i32
    %c0_i32_0 = arith.constant 0 : i32
    %c0_i32_1 = arith.constant 0 : i32
    return %c0_i32, %c0_i32_0 : i32, i32
  }
}

</mosaic_0001>

<llo_original>
// kernel: hkl_forward.1
$region0: #{hkl_forward.1}
  #allocation0 [shape = 'u32[]', space=smem, size = 0x4, offset = 0x4, fixed_abs, tag = 'smem constant byte address 0x4 - core index']
  #allocation1 [shape = 'u32[72,128]{1,0:T(1,128)}', space=vmem, size = 0x9000, scoped, tag = 'internal scratch']
  #allocation2 [shape = 'f32[112,32]{1,0:T(8,128)}', space=vmem, size = 0xe000, scoped, tag = 'scratch operand']
  #allocation3 [shape = 'f32[8,256]{1,0:T(8,128)}', space=vmem, size = 0x2000, scoped, tag = 'scratch operand']
  #allocation4 [shape = 's32[1]{0}', space=sflag, size = 0x4, scoped, tag = 'scoped memory for hkl_forward.1']
  #allocation5 [shape = 'u8[2048]{0}', space=smem, size = 0x800, scoped, tag = 'prefetched SMEM operand 0']
  %s0 = inlined_call_operand.vmem [shape: s32[3,2], index: 0, kind: input, shape index: {}]
  %s1 = inlined_call_operand.vmem [shape: bf16[392,32], index: 1, kind: input, shape index: {}]
  %s2 = inlined_call_operand.vmem [shape: bf16[32,32], index: 2, kind: input, shape index: {}]
  %s3 = inlined_call_operand.vmem [shape: f32[1,32], index: 3, kind: input, shape index: {}]
  %s4 = inlined_call_operand.hbm [shape: bf16[112,392], index: 4, kind: input, shape index: {}]
  %s5 = inlined_call_operand.vmem [shape: bf16[1568,256], index: 5, kind: input, shape index: {}]
  %s6 = inlined_call_operand.vmem [shape: f32[1,256], index: 6, kind: input, shape index: {}]
  %s7 = inlined_call_operand.vmem [shape: bf16[256,256], index: 7, kind: input, shape index: {}]
  %s8 = inlined_call_operand.vmem [shape: f32[1,256], index: 8, kind: input, shape index: {}]
  %s9 = inlined_call_operand.vmem [shape: f32[24,256], index: 9, kind: input, shape index: {}]
  %s10 = inlined_call_operand.vmem [shape: bf16[256,256], index: 10, kind: input, shape index: {}]
  %s11 = inlined_call_operand.vmem [shape: f32[1,256], index: 11, kind: input, shape index: {}]
  %s12 = inlined_call_operand.vmem [shape: f32[8,256], index: 12, kind: output, shape index: {}]
  %s13 = sld [smem:[#allocation0]]
  $region89: #{hkl_forward.1} parent=0
    _
  %s15 = ssub.s32 1, %s13
  %s16 = scalar_select 0, %s15, %s13
  %s18 = sshll.u32 %s0, 4
  %s19 = int_to_ptr.vmem [resolvable:$true] %s18
  %21 = dma.vmem_to_smem %s19, 64, [#allocation5], [#allocation4]
  %23 = dma.done [#allocation4], 64
  %24 = sfence
  $region1: #{hkl_forward.1} parent=0
    #allocation6 [shape = 'u8[114688]{0}', space=vmem, size = 0x1c000, scoped, tag = 'input window, operand 4, single buffered']
    #allocation7 [shape = 's32[2]{0}', space=sflag, size = 0x8, scoped, tag = 'scoped memory for hkl_forward.1']
    %25 = vsyncpa [#allocation7], 0
    loop: start=0, step=1, limit=9
    $region2: #{hkl_forward.1} parent=1 // loop_pre_header
      _
    $region3: #{hkl_forward.1} parent=1 // loop_header
      %s27 = sphi 0, %s31
      %p28 = scmp.ge.s32.totalorder %s27, 9
      %s35 = sphi 0, %s35
      %s37 = sphi 0, %s35
      %s38 = sphi 0, %s37
      %s52 = sphi 0, %s38
      %s56 = sphi 0, %s56
      %s58 = sphi 0, %s56
      %s59 = sphi 0, %s58
      %s73 = sphi 0, %s59
      %s77 = sphi 0, %s77
      %s79 = sphi 0, %s77
      %s80 = sphi 0, %s79
      %s94 = sphi 0, %s80
      %s98 = sphi 0, %s98
      %s100 = sphi 0, %s98
      %s101 = sphi 0, %s100
      %s115 = sphi 0, %s101
      %s121 = sphi 0, %s123
      %s124 = sphi 0, %s121
      %s125 = sphi 0, %s124
      %s141 = sphi 0, %s125
      %s145 = sphi 0, %s145
      %s147 = sphi 0, %s145
      %s148 = sphi 0, %s147
      %s162 = sphi 0, %s148
      %s166 = sphi 0, %s166
      %s168 = sphi 0, %s166
      %s169 = sphi 0, %s168
      %s183 = sphi 0, %s169
      %s187 = sphi 0, %s187
      %s189 = sphi 0, %s187
      %s190 = sphi 0, %s189
      %s204 = sphi 0, %s190
      %s208 = sphi 0, %s208
      %s210 = sphi 0, %s208
      %s211 = sphi 0, %s210
      %s225 = sphi 0, %s211
      %s229 = sphi 0, %s229
      %s231 = sphi 0, %s229
      %s232 = sphi 0, %s231
      %s246 = sphi 0, %s232
      %s250 = sphi 0, %s250
      %s252 = sphi 0, %s250
      %s253 = sphi 0, %s252
      %s267 = sphi 0, %s253
      %s271 = sphi 0, %s271
      %s273 = sphi 0, %s271
      %s274 = sphi 0, %s273
      %s288 = sphi 0, %s274
    $region4: #{hkl_forward.1} parent=1 // loop_header_branch
      %30 = sbr.rel (%p28) target = $region8
    $region5: #{hkl_forward.1} parent=1 // loop_body
      %s32 = ssub.s32 %s27, 1
      %s33 = ssub.s32 %s27, 2
      %s34 = sadd.s32 %s27, 1
      %s36 = sadd.s32 %s35, 1
      %p39 = scmp.eq.s32.totalorder %s27, 6
      %p40 = scmp.ne.s32.totalorder %s35, %s37
      %p41 = scmp.eq.s32.totalorder %s27, 0
      %p42 = por %p40, %p41
      %p43 = scmp.ne.s32.totalorder %s35, %s37
      %p44 = scmp.eq.s32.totalorder %s32, 6
      %p45 = por %p43, %p44
      %p46 = scmp.ne.s32.totalorder %s37, %s38
      %p47 = scmp.eq.s32.totalorder %s32, 0
      %p48 = por %p46, %p47
      %p49 = scmp.ne.s32.totalorder %s37, %s38
      %p50 = scmp.eq.s32.totalorder %s33, 6
      %p51 = por %p49, %p50
      %p53 = scmp.ne.s32.totalorder %s38, %s52
      %p54 = scmp.eq.s32.totalorder %s33, 0
      %p55 = por %p53, %p54
      %s57 = sadd.s32 %s56, 1
      %p60 = scmp.eq.s32.totalorder %s27, 6
      %p61 = scmp.ne.s32.totalorder %s56, %s58
      %p62 = scmp.eq.s32.totalorder %s27, 0
      %p63 = por %p61, %p62
      %p64 = scmp.ne.s32.totalorder %s56, %s58
      %p65 = scmp.eq.s32.totalorder %s32, 6
      %p66 = por %p64, %p65
      %p67 = scmp.ne.s32.totalorder %s58, %s59
      %p68 = scmp.eq.s32.totalorder %s32, 0
      %p69 = por %p67, %p68
      %p70 = scmp.ne.s32.totalorder %s58, %s59
      %p71 = scmp.eq.s32.totalorder %s33, 6
      %p72 = por %p70, %p71
      %p74 = scmp.ne.s32.totalorder %s59, %s73
      %p75 = scmp.eq.s32.totalorder %s33, 0
      %p76 = por %p74, %p75
      %s78 = sadd.s32 %s77, 1
      %p81 = scmp.eq.s32.totalorder %s27, 6
      %p82 = scmp.ne.s32.totalorder %s77, %s79
      %p83 = scmp.eq.s32.totalorder %s27, 0
      %p84 = por %p82, %p83
      %p85 = scmp.ne.s32.totalorder %s77, %s79
      %p86 = scmp.eq.s32.totalorder %s32, 6
      %p87 = por %p85, %p86
      %p88 = scmp.ne.s32.totalorder %s79, %s80
      %p89 = scmp.eq.s32.totalorder %s32, 0
      %p90 = por %p88, %p89
      %p91 = scmp.ne.s32.totalorder %s79, %s80
      %p92 = scmp.eq.s32.totalorder %s33, 6
      %p93 = por %p91, %p92
      %p95 = scmp.ne.s32.totalorder %s80, %s94
      %p96 = scmp.eq.s32.totalorder %s33, 0
      %p97 = por %p95, %p96
      %s99 = sadd.s32 %s98, 1
      %p102 = scmp.eq.s32.totalorder %s27, 6
      %p103 = scmp.ne.s32.totalorder %s98, %s100
      %p104 = scmp.eq.s32.totalorder %s27, 0
      %p105 = por %p103, %p104
      %p106 = scmp.ne.s32.totalorder %s98, %s100
      %p107 = scmp.eq.s32.totalorder %s32, 6
      %p108 = por %p106, %p107
      %p109 = scmp.ne.s32.totalorder %s100, %s101
      %p110 = scmp.eq.s32.totalorder %s32, 0
      %p111 = por %p109, %p110
      %p112 = scmp.ne.s32.totalorder %s100, %s101
      %p113 = scmp.eq.s32.totalorder %s33, 6
      %p114 = por %p112, %p113
      %p116 = scmp.ne.s32.totalorder %s101, %s115
      %p117 = scmp.eq.s32.totalorder %s33, 0
      %p118 = por %p116, %p117
      %s119 = ssub.s32 %s27, %s34
      %p120 = scmp.eq.s32.totalorder %s119, 0
      %s122 = sadd.s32 %s121, 1
      %s123 = scalar_select %p120, %s121, %s122
      %p126 = pneg %p120
      %p127 = scmp.eq.s32.totalorder %s27, 6
      %p128 = por %p126, %p127
      %p129 = scmp.ne.s32.totalorder %s121, %s124
      %p130 = scmp.eq.s32.totalorder %s27, 0
      %p131 = por %p129, %p130
      %p132 = scmp.ne.s32.totalorder %s121, %s124
      %p133 = scmp.eq.s32.totalorder %s32, 6
      %p134 = por %p132, %p133
      %p135 = scmp.ne.s32.totalorder %s124, %s125
      %p136 = scmp.eq.s32.totalorder %s32, 0
      %p137 = por %p135, %p136
      %p138 = scmp.ne.s32.totalorder %s124, %s125
      %p139 = scmp.eq.s32.totalorder %s33, 6
      %p140 = por %p138, %p139
      %p142 = scmp.ne.s32.totalorder %s125, %s141
      %p143 = scmp.eq.s32.totalorder %s33, 0
      %p144 = por %p142, %p143
      %s146 = sadd.s32 %s145, 1
      %p149 = scmp.eq.s32.totalorder %s27, 6
      %p150 = scmp.ne.s32.totalorder %s145, %s147
      %p151 = scmp.eq.s32.totalorder %s27, 0
      %p152 = por %p150, %p151
      %p153 = scmp.ne.s32.totalorder %s145, %s147
      %p154 = scmp.eq.s32.totalorder %s32, 6
      %p155 = por %p153, %p154
      %p156 = scmp.ne.s32.totalorder %s147, %s148
      %p157 = scmp.eq.s32.totalorder %s32, 0
      %p158 = por %p156, %p157
      %p159 = scmp.ne.s32.totalorder %s147, %s148
      %p160 = scmp.eq.s32.totalorder %s33, 6
      %p161 = por %p159, %p160
      %p163 = scmp.ne.s32.totalorder %s148, %s162
      %p164 = scmp.eq.s32.totalorder %s33, 0
      %p165 = por %p163, %p164
      %s167 = sadd.s32 %s166, 1
      %p170 = scmp.eq.s32.totalorder %s27, 6
      %p171 = scmp.ne.s32.totalorder %s166, %s168
      %p172 = scmp.eq.s32.totalorder %s27, 0
      %p173 = por %p171, %p172
      %p174 = scmp.ne.s32.totalorder %s166, %s168
      %p175 = scmp.eq.s32.totalorder %s32, 6
      %p176 = por %p174, %p175
      %p177 = scmp.ne.s32.totalorder %s168, %s169
      %p178 = scmp.eq.s32.totalorder %s32, 0
      %p179 = por %p177, %p178
      %p180 = scmp.ne.s32.totalorder %s168, %s169
      %p181 = scmp.eq.s32.totalorder %s33, 6
      %p182 = por %p180, %p181
      %p184 = scmp.ne.s32.totalorder %s169, %s183
      %p185 = scmp.eq.s32.totalorder %s33, 0
      %p186 = por %p184, %p185
      %s188 = sadd.s32 %s187, 1
      %p191 = scmp.eq.s32.totalorder %s27, 6
      %p192 = scmp.ne.s32.totalorder %s187, %s189
      %p193 = scmp.eq.s32.totalorder %s27, 0
      %p194 = por %p192, %p193
      %p195 = scmp.ne.s32.totalorder %s187, %s189
      %p196 = scmp.eq.s32.totalorder %s32, 6
      %p197 = por %p195, %p196
      %p198 = scmp.ne.s32.totalorder %s189, %s190
      %p199 = scmp.eq.s32.totalorder %s32, 0
      %p200 = por %p198, %p199
      %p201 = scmp.ne.s32.totalorder %s189, %s190
      %p202 = scmp.eq.s32.totalorder %s33, 6
      %p203 = por %p201, %p202
      %p205 = scmp.ne.s32.totalorder %s190, %s204
      %p206 = scmp.eq.s32.totalorder %s33, 0
      %p207 = por %p205, %p206
      %s209 = sadd.s32 %s208, 1
      %p212 = scmp.eq.s32.totalorder %s27, 6
      %p213 = scmp.ne.s32.totalorder %s208, %s210
      %p214 = scmp.eq.s32.totalorder %s27, 0
      %p215 = por %p213, %p214
      %p216 = scmp.ne.s32.totalorder %s208, %s210
      %p217 = scmp.eq.s32.totalorder %s32, 6
      %p218 = por %p216, %p217
      %p219 = scmp.ne.s32.totalorder %s210, %s211
      %p220 = scmp.eq.s32.totalorder %s32, 0
      %p221 = por %p219, %p220
      %p222 = scmp.ne.s32.totalorder %s210, %s211
      %p223 = scmp.eq.s32.totalorder %s33, 6
      %p224 = por %p222, %p223
      %p226 = scmp.ne.s32.totalorder %s211, %s225
      %p227 = scmp.eq.s32.totalorder %s33, 0
      %p228 = por %p226, %p227
      %s230 = sadd.s32 %s229, 1
      %p233 = scmp.eq.s32.totalorder %s27, 6
      %p234 = scmp.ne.s32.totalorder %s229, %s231
      %p235 = scmp.eq.s32.totalorder %s27, 0
      %p236 = por %p234, %p235
      %p237 = scmp.ne.s32.totalorder %s229, %s231
      %p238 = scmp.eq.s32.totalorder %s32, 6
      %p239 = por %p237, %p238
      %p240 = scmp.ne.s32.totalorder %s231, %s232
      %p241 = scmp.eq.s32.totalorder %s32, 0
      %p242 = por %p240, %p241
      %p243 = scmp.ne.s32.totalorder %s231, %s232
      %p244 = scmp.eq.s32.totalorder %s33, 6
      %p245 = por %p243, %p244
      %p247 = scmp.ne.s32.totalorder %s232, %s246
      %p248 = scmp.eq.s32.totalorder %s33, 0
      %p249 = por %p247, %p248
      %s251 = sadd.s32 %s250, 1
      %p254 = scmp.eq.s32.totalorder %s27, 6
      %p255 = scmp.ne.s32.totalorder %s250, %s252
      %p256 = scmp.eq.s32.totalorder %s27, 0
      %p257 = por %p255, %p256
      %p258 = scmp.ne.s32.totalorder %s250, %s252
      %p259 = scmp.eq.s32.totalorder %s32, 6
      %p260 = por %p258, %p259
      %p261 = scmp.ne.s32.totalorder %s252, %s253
      %p262 = scmp.eq.s32.totalorder %s32, 0
      %p263 = por %p261, %p262
      %p264 = scmp.ne.s32.totalorder %s252, %s253
      %p265 = scmp.eq.s32.totalorder %s33, 6
      %p266 = por %p264, %p265
      %p268 = scmp.ne.s32.totalorder %s253, %s267
      %p269 = scmp.eq.s32.totalorder %s33, 0
      %p270 = por %p268, %p269
      %s272 = sadd.s32 %s271, 1
      %p275 = scmp.eq.s32.totalorder %s27, 6
      %p276 = scmp.ne.s32.totalorder %s271, %s273
      %p277 = scmp.eq.s32.totalorder %s27, 0
      %p278 = por %p276, %p277
      %p279 = scmp.ne.s32.totalorder %s271, %s273
      %p280 = scmp.eq.s32.totalorder %s32, 6
      %p281 = por %p279, %p280
      %p282 = scmp.ne.s32.totalorder %s273, %s274
      %p283 = scmp.eq.s32.totalorder %s32, 0
      %p284 = por %p282, %p283
      %p285 = scmp.ne.s32.totalorder %s273, %s274
      %p286 = scmp.eq.s32.totalorder %s33, 6
      %p287 = por %p285, %p286
      %p289 = scmp.ne.s32.totalorder %s274, %s288
      %p290 = scmp.eq.s32.totalorder %s33, 0
      %p291 = por %p289, %p290
      %p292 = scmp.le.s32.totalorder 1, %s27
      %p293 = scmp.lt.s32.totalorder %s27, 8
      %p294 = pnand %p292, %p293
      %p295 = pneg %p294
      // Predicated region
      $region9: #{hkl_forward.1} parent=5 // pred_check
        _
      $region10: #{hkl_forward.1} parent=5 // pred_check_branch
        %297 = sbr.rel (%p294) target = $region12
      $region11: #{hkl_forward.1} parent=5 // pred_region
        %s298 = ssub.s32 %s27, 1
        // Predicated region
        $region13: #{hkl_forward.1} parent=11 // pred_check
          %p299 = pneg %p48
        $region14: #{hkl_forward.1} parent=11 // pred_check_branch
          %301 = sbr.rel (%p299) target = $region16
        $region15: #{hkl_forward.1} parent=11 // pred_region
          _
        $region16: #{hkl_forward.1} parent=11 // pred_fallthru
          _
        // Predicated region
        $region17: #{hkl_forward.1} parent=11 // pred_check
          %p302 = pneg %p69
        $region18: #{hkl_forward.1} parent=11 // pred_check_branch
          %304 = sbr.rel (%p302) target = $region20
        $region19: #{hkl_forward.1} parent=11 // pred_region
          _
        $region20: #{hkl_forward.1} parent=11 // pred_fallthru
          _
        // Predicated region
        $region21: #{hkl_forward.1} parent=11 // pred_check
          %p305 = pneg %p90
        $region22: #{hkl_forward.1} parent=11 // pred_check_branch
          %307 = sbr.rel (%p305) target = $region24
        $region23: #{hkl_forward.1} parent=11 // pred_region
          _
        $region24: #{hkl_forward.1} parent=11 // pred_fallthru
          _
        // Predicated region
        $region25: #{hkl_forward.1} parent=11 // pred_check
          %p308 = pneg %p111
        $region26: #{hkl_forward.1} parent=11 // pred_check_branch
          %310 = sbr.rel (%p308) target = $region28
        $region27: #{hkl_forward.1} parent=11 // pred_region
          %312 = vsyncadd [#allocation7], 0
          %s313 = sshll.u32 %s4, 4
          %s314 = int_to_ptr.hbm [resolvable:$true] %s313
          %s315 = sshll.u32 [#allocation6], 4
          %s316 = int_to_ptr.vmem [resolvable:$true] %s315
          %321 = dma.hbm_to_vmem [thread:$0]  %s314, 3584, %s316, [#allocation7], 256, 256, 16
        $region28: #{hkl_forward.1} parent=11 // pred_fallthru
          _
        // Predicated region
        $region29: #{hkl_forward.1} parent=11 // pred_check
          %p322 = pneg %p158
        $region30: #{hkl_forward.1} parent=11 // pred_check_branch
          %324 = sbr.rel (%p322) target = $region32
        $region31: #{hkl_forward.1} parent=11 // pred_region
          _
        $region32: #{hkl_forward.1} parent=11 // pred_fallthru
          _
        // Predicated region
        $region33: #{hkl_forward.1} parent=11 // pred_check
          %p325 = pneg %p179
        $region34: #{hkl_forward.1} parent=11 // pred_check_branch
          %327 = sbr.rel (%p325) target = $region36
        $region35: #{hkl_forward.1} parent=11 // pred_region
          _
        $region36: #{hkl_forward.1} parent=11 // pred_fallthru
          _
        // Predicated region
        $region37: #{hkl_forward.1} parent=11 // pred_check
          %p328 = pneg %p200
        $region38: #{hkl_forward.1} parent=11 // pred_check_branch
          %330 = sbr.rel (%p328) target = $region40
        $region39: #{hkl_forward.1} parent=11 // pred_region
          _
        $region40: #{hkl_forward.1} parent=11 // pred_fallthru
          _
        // Predicated region
        $region41: #{hkl_forward.1} parent=11 // pred_check
          %p331 = pneg %p221
        $region42: #{hkl_forward.1} parent=11 // pred_check_branch
          %333 = sbr.rel (%p331) target = $region44
        $region43: #{hkl_forward.1} parent=11 // pred_region
          _
        $region44: #{hkl_forward.1} parent=11 // pred_fallthru
          _
        // Predicated region
        $region45: #{hkl_forward.1} parent=11 // pred_check
          %p334 = pneg %p242
        $region46: #{hkl_forward.1} parent=11 // pred_check_branch
          %336 = sbr.rel (%p334) target = $region48
        $region47: #{hkl_forward.1} parent=11 // pred_region
          _
        $region48: #{hkl_forward.1} parent=11 // pred_fallthru
          _
        // Predicated region
        $region49: #{hkl_forward.1} parent=11 // pred_check
          %p337 = pneg %p263
        $region50: #{hkl_forward.1} parent=11 // pred_check_branch
          %339 = sbr.rel (%p337) target = $region52
        $region51: #{hkl_forward.1} parent=11 // pred_region
          _
        $region52: #{hkl_forward.1} parent=11 // pred_fallthru
          _
      $region12: #{hkl_forward.1} parent=5 // pred_fallthru
        _
      %p340 = scmp.lt.s32.totalorder %s27, 7
      // Predicated region
      $region53: #{hkl_forward.1} parent=5 // pred_check
        %p341 = pneg %p340
      $region54: #{hkl_forward.1} parent=5 // pred_check_branch
        %343 = sbr.rel (%p341) target = $region56
      $region55: #{hkl_forward.1} parent=5 // pred_region
        // Predicated region
        $region57: #{hkl_forward.1} parent=55 // pred_check
          %p344 = pneg %p131
        $region58: #{hkl_forward.1} parent=55 // pred_check_branch
          %346 = sbr.rel (%p344) target = $region60
        $region59: #{hkl_forward.1} parent=55 // pred_region
          %s347 = smul.u32 28, %s27
          %p348 = scmp.lt.s32.totalorder %s347, 195
          %s349 = scalar_select %p348, %s347, 195
          %s350 = smul.addr %s349, 2
          %s351 = smul.addr %s350, 4
          %s352 = scalar_lea.vmem %s5, %s351
          %s353 = smul.u32 28, %s27
        $region60: #{hkl_forward.1} parent=55 // pred_fallthru
          _
      $region56: #{hkl_forward.1} parent=5 // pred_fallthru
        _
      %p354 = scmp.le.s32.totalorder 1, %s27
      %p355 = scmp.lt.s32.totalorder %s27, 8
      %p356 = pnand %p354, %p355
      %p357 = pneg %p356
      // Predicated region
      $region61: #{hkl_forward.1} parent=5 // pred_check
        _
      $region62: #{hkl_forward.1} parent=5 // pred_check_branch
        %359 = sbr.rel (%p356) target = $region64
      $region63: #{hkl_forward.1} parent=5 // pred_region
        %s360 = ssub.s32 %s27, 1
        // Predicated region
        $region65: #{hkl_forward.1} parent=63 // pred_check
          %p361 = pneg %p111
        $region66: #{hkl_forward.1} parent=63 // pred_check_branch
          %363 = sbr.rel (%p361) target = $region68
        $region67: #{hkl_forward.1} parent=63 // pred_region
          %365 = dma.done [#allocation7], 3584
        $region68: #{hkl_forward.1} parent=63 // pred_fallthru
          _
        %p366 = pneg %p48
        %p367 = pneg %p45
        %p368 = pneg %p69
        %p369 = pneg %p66
        %p370 = pneg %p90
        %p371 = pneg %p87
        %p372 = pneg %p111
        %p373 = pneg %p108
        %s374 = smul.u32 28, %s32
        %p375 = scmp.lt.s32.totalorder %s374, 195
        %s376 = scalar_select %p375, %s374, 195
        %s377 = smul.addr %s376, 2
        %s378 = smul.addr %s377, 4
        %s379 = scalar_lea.vmem %s5, %s378
        %p380 = pneg %p137
        %p381 = pneg %p134
        %p382 = pneg %p158
        %p383 = pneg %p155
        %p384 = pneg %p179
        %p385 = pneg %p176
        %p386 = pneg %p200
        %p387 = pneg %p197
        %p388 = pneg %p221
        %p389 = pneg %p218
        %p390 = pneg %p242
        %p391 = pneg %p239
        %p392 = pneg %p263
        %p393 = pneg %p260
        %p394 = pneg %p284
        %p395 = pneg %p281
        %s396 = smul.u32 28, %s32
        %p397 = scmp.lt.s32.totalorder %s396, 195
        %s398 = scalar_select %p397, %s396, 195
        %s399 = smul.addr %s398, 2
        %s400 = smul.addr %s399, 4
        %s401 = scalar_lea.vmem %s5, %s400
        %s402 = smul.u32 28, %s32
        %p404 = scmp.eq.s32.totalorder %s32, 0
        // Predicated region
        $region69: #{hkl_forward.1} parent=63 // pred_check
          %p405 = pneg %p404
        $region70: #{hkl_forward.1} parent=63 // pred_check_branch
          %407 = sbr.rel (%p405) target = $region72
        $region71: #{hkl_forward.1} parent=63 // pred_region
          %v408 = vld [vmem:[%s1] sm:$0xf]
          %v409 = vld [vmem:[%s1 + $0x4] sm:$0xf]
          %v410 = vld [vmem:[%s1 + $0x8] sm:$0xf]
          %v411 = vld [vmem:[%s1 + $0xc] sm:$0xf]
          %v412 = vld [vmem:[%s1 + $0x10] sm:$0xf]
          %v413 = vld [vmem:[%s1 + $0x14] sm:$0xf]
          %v414 = vld [vmem:[%s1 + $0x18] sm:$0xf]
          %v415 = vld [vmem:[%s1 + $0x1c] sm:$0xf]
          %v416 = vld [vmem:[%s1 + $0x20] sm:$0xf]
          %v417 = vld [vmem:[%s1 + $0x24] sm:$0xf]
          %v418 = vld [vmem:[%s1 + $0x28] sm:$0xf]
          %v419 = vld [vmem:[%s1 + $0x2c] sm:$0xf]
          %v420 = vld [vmem:[%s1 + $0x30] sm:$0xf]
          %v421 = vld [vmem:[%s1 + $0x34] sm:$0xf]
          %v422 = vld [vmem:[%s1 + $0x38] sm:$0xf]
          %v423 = vld [vmem:[%s1 + $0x3c] sm:$0xf]
          %v424 = vld [vmem:[%s1 + $0x40] sm:$0xf]
          %v425 = vld [vmem:[%s1 + $0x44] sm:$0xf]
          %v426 = vld [vmem:[%s1 + $0x48] sm:$0xf]
          %v427 = vld [vmem:[%s1 + $0x4c] sm:$0xf]
          %v428 = vld [vmem:[%s1 + $0x50] sm:$0xf]
          %v429 = vld [vmem:[%s1 + $0x54] sm:$0xf]
          %v430 = vld [vmem:[%s1 + $0x58] sm:$0xf]
          %v431 = vld [vmem:[%s1 + $0x5c] sm:$0xf]
          %v432 = vld [vmem:[%s1 + $0x60] sm:$0xf]
          %v433 = vld [vmem:[%s1 + $0x64] sm:$0xf]
          %v434 = vld [vmem:[%s1 + $0x68] sm:$0xf]
          %v435 = vld [vmem:[%s1 + $0x6c] sm:$0xf]
          %v436 = vld [vmem:[%s1 + $0x70] sm:$0xf]
          %v437 = vld [vmem:[%s1 + $0x74] sm:$0xf]
          %v438 = vld [vmem:[%s1 + $0x78] sm:$0xf]
          %v439 = vld [vmem:[%s1 + $0x7c] sm:$0xf]
          %v440 = vld [vmem:[%s1 + $0x80] sm:$0xf]
          %v441 = vld [vmem:[%s1 + $0x84] sm:$0xf]
          %v442 = vld [vmem:[%s1 + $0x88] sm:$0xf]
          %v443 = vld [vmem:[%s1 + $0x8c] sm:$0xf]
          %v444 = vld [vmem:[%s1 + $0x90] sm:$0xf]
          %v445 = vld [vmem:[%s1 + $0x94] sm:$0xf]
          %v446 = vld [vmem:[%s1 + $0x98] sm:$0xf]
          %v447 = vld [vmem:[%s1 + $0x9c] sm:$0xf]
          %v448 = vld [vmem:[%s1 + $0xa0] sm:$0xf]
          %v449 = vld [vmem:[%s1 + $0xa4] sm:$0xf]
          %v450 = vld [vmem:[%s1 + $0xa8] sm:$0xf]
          %v451 = vld [vmem:[%s1 + $0xac] sm:$0xf]
          %v452 = vld [vmem:[%s1 + $0xb0] sm:$0xf]
          %v453 = vld [vmem:[%s1 + $0xb4] sm:$0xf]
          %v454 = vld [vmem:[%s1 + $0xb8] sm:$0xf]
          %v455 = vld [vmem:[%s1 + $0xbc] sm:$0xf]
          %v456 = vld [vmem:[%s1 + $0xc0] sm:$0xf]
          %v457 = vld [vmem:[%s2] sm:$0xf]
          %v458 = vld [vmem:[%s2 + $0x4] sm:$0xf]
          %v459 = vld [vmem:[%s2 + $0x8] sm:$0xf]
          %v460 = vld [vmem:[%s2 + $0xc] sm:$0xf]
          %v461 = vld [vmem:[%s3] sm:$0x1]
          %v463 = vperm.slane %v461, 0
          %v514 = vunpack.c.l.b16 %v408
          %v515 = vunpack.c.l.b16 %v409
          %v516 = vunpack.c.l.b16 %v410
          %v517 = vunpack.c.l.b16 %v411
          %v518 = vunpack.c.l.b16 %v412
          %v519 = vunpack.c.l.b16 %v413
          %v520 = vunpack.c.l.b16 %v414
          %v521 = vunpack.c.l.b16 %v415
          %v522 = vunpack.c.l.b16 %v416
          %v523 = vunpack.c.l.b16 %v417
          %v524 = vunpack.c.l.b16 %v418
          %v525 = vunpack.c.l.b16 %v419
          %v526 = vunpack.c.l.b16 %v420
          %v527 = vunpack.c.l.b16 %v421
          %v528 = vunpack.c.l.b16 %v422
          %v529 = vunpack.c.l.b16 %v423
          %v530 = vunpack.c.l.b16 %v424
          %v531 = vunpack.c.l.b16 %v425
          %v532 = vunpack.c.l.b16 %v426
          %v533 = vunpack.c.l.b16 %v427
          %v534 = vunpack.c.l.b16 %v428
          %v535 = vunpack.c.l.b16 %v429
          %v536 = vunpack.c.l.b16 %v430
          %v537 = vunpack.c.l.b16 %v431
          %v538 = vunpack.c.l.b16 %v432
          %v539 = vunpack.c.l.b16 %v433
          %v540 = vunpack.c.l.b16 %v434
          %v541 = vunpack.c.l.b16 %v435
          %v542 = vunpack.c.l.b16 %v436
          %v543 = vunpack.c.l.b16 %v437
          %v544 = vunpack.c.l.b16 %v438
          %v545 = vunpack.c.l.b16 %v439
          %v546 = vunpack.c.l.b16 %v440
          %v547 = vunpack.c.l.b16 %v441
          %v548 = vunpack.c.l.b16 %v442
          %v549 = vunpack.c.l.b16 %v443
          %v550 = vunpack.c.l.b16 %v444
          %v551 = vunpack.c.l.b16 %v445
          %v552 = vunpack.c.l.b16 %v446
          %v553 = vunpack.c.l.b16 %v447
          %v554 = vunpack.c.l.b16 %v448
          %v555 = vunpack.c.l.b16 %v449
          %v556 = vunpack.c.l.b16 %v450
          %v557 = vunpack.c.l.b16 %v451
          %v558 = vunpack.c.l.b16 %v452
          %v559 = vunpack.c.l.b16 %v453
          %v560 = vunpack.c.l.b16 %v454
          %v561 = vunpack.c.l.b16 %v455
          %v562 = vunpack.c.l.b16 %v456
          %v563 = vpack.c.b16 %v515, %v514
          %v564 = vpack.c.b16 %v517, %v516
          %v565 = vpack.c.b16 %v519, %v518
          %v566 = vpack.c.b16 %v521, %v520
          %v567 = vpack.c.b16 %v523, %v522
          %v568 = vpack.c.b16 %v525, %v524
          %v569 = vpack.c.b16 %v527, %v526
          %v570 = vpack.c.b16 %v529, %v528
          %v571 = vpack.c.b16 %v531, %v530
          %v572 = vpack.c.b16 %v533, %v532
          %v573 = vpack.c.b16 %v535, %v534
          %v574 = vpack.c.b16 %v537, %v536
          %v575 = vpack.c.b16 %v539, %v538
          %v576 = vpack.c.b16 %v541, %v540
          %v577 = vpack.c.b16 %v543, %v542
          %v578 = vpack.c.b16 %v545, %v544
          %v579 = vpack.c.b16 %v547, %v546
          %v580 = vpack.c.b16 %v549, %v548
          %v581 = vpack.c.b16 %v551, %v550
          %v582 = vpack.c.b16 %v553, %v552
          %v583 = vpack.c.b16 %v555, %v554
          %v584 = vpack.c.b16 %v557, %v556
          %v585 = vpack.c.b16 %v559, %v558
          %v586 = vpack.c.b16 %v561, %v560
          %v587 = vpack.c.b16 %v562, %v562
          %v592 = vunpack.c.l.b16 %v457
          %v593 = vunpack.c.l.b16 %v458
          %v594 = vunpack.c.l.b16 %v459
          %v595 = vunpack.c.l.b16 %v460
          %v596 = vpack.c.b16 %v593, %v592
          %v597 = vpack.c.b16 %v595, %v594
          %vm600 = vcmask 261120
          %v602 = vsel %vm600, %v563, 0
          %v605 = vsel %vm600, %v564, 0
          %v608 = vsel %vm600, %v565, 0
          %v611 = vsel %vm600, %v566, 0
          %v614 = vsel %vm600, %v567, 0
          %v617 = vsel %vm600, %v568, 0
          %v620 = vsel %vm600, %v569, 0
          %v623 = vsel %vm600, %v570, 0
          %v626 = vsel %vm600, %v571, 0
          %v629 = vsel %vm600, %v572, 0
          %v632 = vsel %vm600, %v573, 0
          %v635 = vsel %vm600, %v574, 0
          %v638 = vsel %vm600, %v575, 0
          %v641 = vsel %vm600, %v576, 0
          %v644 = vsel %vm600, %v577, 0
          %v647 = vsel %vm600, %v578, 0
          %v650 = vsel %vm600, %v579, 0
          %v653 = vsel %vm600, %v580, 0
          %v656 = vsel %vm600, %v581, 0
          %v659 = vsel %vm600, %v582, 0
          %v662 = vsel %vm600, %v583, 0
          %v665 = vsel %vm600, %v584, 0
          %v668 = vsel %vm600, %v585, 0
          %v671 = vsel %vm600, %v586, 0
          %v674 = vsel %vm600, %v587, 0
          %676 = vmatpush.bf16.msra.mxu0 0
          %677 = vmatpush.bf16.msra.mxu0 0
          %678 = vmatpush.bf16.msra.mxu0 0
          %679 = vmatpush.bf16.msra.mxu0 0
          %680 = vmatpush.bf16.msra.mxu0 0
          %681 = vmatpush.bf16.msra.mxu0 0
          %682 = vmatpush.bf16.msra.mxu0 %v597
          %683 = vmatpush.bf16.msra.mxu0 %v596
          %684 = vmatmul.bf16.gmra.mxu0 %v602
          %v685 = vpop.f32.mrf.mxu0
          %v686 = vadd.f32 %v463, %v685
          %v687 = vpop.f32.mrf.mxu0
          %v688 = vadd.f32 %v463, %v687
          %689 = vmatmul.bf16.gmra.mxu0 %v605
          %v690 = vpop.f32.mrf.mxu0
          %v691 = vadd.f32 %v463, %v690
          %v692 = vpop.f32.mrf.mxu0
          %v693 = vadd.f32 %v463, %v692
          %694 = vmatmul.bf16.gmra.mxu0 %v608
          %v695 = vpop.f32.mrf.mxu0
          %v696 = vadd.f32 %v463, %v695
          %v697 = vpop.f32.mrf.mxu0
          %v698 = vadd.f32 %v463, %v697
          %699 = vmatmul.bf16.gmra.mxu0 %v611
          %v700 = vpop.f32.mrf.mxu0
          %v701 = vadd.f32 %v463, %v700
          %v702 = vpop.f32.mrf.mxu0
          %v703 = vadd.f32 %v463, %v702
          %704 = vmatmul.bf16.gmra.mxu0 %v614
          %v705 = vpop.f32.mrf.mxu0
          %v706 = vadd.f32 %v463, %v705
          %v707 = vpop.f32.mrf.mxu0
          %v708 = vadd.f32 %v463, %v707
          %709 = vmatmul.bf16.gmra.mxu0 %v617
          %v710 = vpop.f32.mrf.mxu0
          %v711 = vadd.f32 %v463, %v710
          %v712 = vpop.f32.mrf.mxu0
          %v713 = vadd.f32 %v463, %v712
          %714 = vmatmul.bf16.gmra.mxu0 %v620
          %v715 = vpop.f32.mrf.mxu0
          %v716 = vadd.f32 %v463, %v715
          %v717 = vpop.f32.mrf.mxu0
          %v718 = vadd.f32 %v463, %v717
          %719 = vmatmul.bf16.gmra.mxu0 %v623
          %v720 = vpop.f32.mrf.mxu0
          %v721 = vadd.f32 %v463, %v720
          %v722 = vpop.f32.mrf.mxu0
          %v723 = vadd.f32 %v463, %v722
          %724 = vmatmul.bf16.gmra.mxu0 %v626
          %v725 = vpop.f32.mrf.mxu0
          %v726 = vadd.f32 %v463, %v725
          %v727 = vpop.f32.mrf.mxu0
          %v728 = vadd.f32 %v463, %v727
          %729 = vmatmul.bf16.gmra.mxu0 %v629
          %v730 = vpop.f32.mrf.mxu0
          %v731 = vadd.f32 %v463, %v730
          %v732 = vpop.f32.mrf.mxu0
          %v733 = vadd.f32 %v463, %v732
          %734 = vmatmul.bf16.gmra.mxu0 %v632
          %v735 = vpop.f32.mrf.mxu0
          %v736 = vadd.f32 %v463, %v735
          %v737 = vpop.f32.mrf.mxu0
          %v738 = vadd.f32 %v463, %v737
          %739 = vmatmul.bf16.gmra.mxu0 %v635
          %v740 = vpop.f32.mrf.mxu0
          %v741 = vadd.f32 %v463, %v740
          %v742 = vpop.f32.mrf.mxu0
          %v743 = vadd.f32 %v463, %v742
          %744 = vmatmul.bf16.gmra.mxu0 %v638
          %v745 = vpop.f32.mrf.mxu0
          %v746 = vadd.f32 %v463, %v745
          %v747 = vpop.f32.mrf.mxu0
          %v748 = vadd.f32 %v463, %v747
          %749 = vmatmul.bf16.gmra.mxu0 %v641
          %v750 = vpop.f32.mrf.mxu0
          %v751 = vadd.f32 %v463, %v750
          %v752 = vpop.f32.mrf.mxu0
          %v753 = vadd.f32 %v463, %v752
          %754 = vmatmul.bf16.gmra.mxu0 %v644
          %v755 = vpop.f32.mrf.mxu0
          %v756 = vadd.f32 %v463, %v755
          %v757 = vpop.f32.mrf.mxu0
          %v758 = vadd.f32 %v463, %v757
          %759 = vmatmul.bf16.gmra.mxu0 %v647
          %v760 = vpop.f32.mrf.mxu0
          %v761 = vadd.f32 %v463, %v760
          %v762 = vpop.f32.mrf.mxu0
          %v763 = vadd.f32 %v463, %v762
          %764 = vmatmul.bf16.gmra.mxu0 %v650
          %v765 = vpop.f32.mrf.mxu0
          %v766 = vadd.f32 %v463, %v765
          %v767 = vpop.f32.mrf.mxu0
          %v768 = vadd.f32 %v463, %v767
          %769 = vmatmul.bf16.gmra.mxu0 %v653
          %v770 = vpop.f32.mrf.mxu0
          %v771 = vadd.f32 %v463, %v770
          %v772 = vpop.f32.mrf.mxu0
          %v773 = vadd.f32 %v463, %v772
          %774 = vmatmul.bf16.gmra.mxu0 %v656
          %v775 = vpop.f32.mrf.mxu0
          %v776 = vadd.f32 %v463, %v775
          %v777 = vpop.f32.mrf.mxu0
          %v778 = vadd.f32 %v463, %v777
          %779 = vmatmul.bf16.gmra.mxu0 %v659
          %v780 = vpop.f32.mrf.mxu0
          %v781 = vadd.f32 %v463, %v780
          %v782 = vpop.f32.mrf.mxu0
          %v783 = vadd.f32 %v463, %v782
          %784 = vmatmul.bf16.gmra.mxu0 %v662
          %v785 = vpop.f32.mrf.mxu0
          %v786 = vadd.f32 %v463, %v785
          %v787 = vpop.f32.mrf.mxu0
          %v788 = vadd.f32 %v463, %v787
          %789 = vmatmul.bf16.gmra.mxu0 %v665
          %v790 = vpop.f32.mrf.mxu0
          %v791 = vadd.f32 %v463, %v790
          %v792 = vpop.f32.mrf.mxu0
          %v793 = vadd.f32 %v463, %v792
          %794 = vmatmul.bf16.gmra.mxu0 %v668
          %v795 = vpop.f32.mrf.mxu0
          %v796 = vadd.f32 %v463, %v795
          %v797 = vpop.f32.mrf.mxu0
          %v798 = vadd.f32 %v463, %v797
          %799 = vmatmul.bf16.gmra.mxu0 %v671
          %v800 = vpop.f32.mrf.mxu0
          %v801 = vadd.f32 %v463, %v800
          %v802 = vpop.f32.mrf.mxu0
          %v803 = vadd.f32 %v463, %v802
          %804 = vmatmul.bf16.gmra.mxu0 %v674
          %v805 = vpop.f32.mrf.mxu0
          %v806 = vadd.f32 %v463, %v805
          %v807 = vpop.f32.mrf.mxu0
          %808 = vdwg.mxu0
          %v809 = vmax.f32 %v686, 0.0
          %v810 = vmax.f32 %v688, 0.0
          %v811 = vmax.f32 %v691, 0.0
          %v812 = vmax.f32 %v693, 0.0
          %v813 = vmax.f32 %v696, 0.0
          %v814 = vmax.f32 %v698, 0.0
          %v815 = vmax.f32 %v701, 0.0
          %v816 = vmax.f32 %v703, 0.0
          %v817 = vmax.f32 %v706, 0.0
          %v818 = vmax.f32 %v708, 0.0
          %v819 = vmax.f32 %v711, 0.0
          %v820 = vmax.f32 %v713, 0.0
          %v821 = vmax.f32 %v716, 0.0
          %v822 = vmax.f32 %v718, 0.0
          %v823 = vmax.f32 %v721, 0.0
          %v824 = vmax.f32 %v723, 0.0
          %v825 = vmax.f32 %v726, 0.0
          %v826 = vmax.f32 %v728, 0.0
          %v827 = vmax.f32 %v731, 0.0
          %v828 = vmax.f32 %v733, 0.0
          %v829 = vmax.f32 %v736, 0.0
          %v830 = vmax.f32 %v738, 0.0
          %v831 = vmax.f32 %v741, 0.0
          %v832 = vmax.f32 %v743, 0.0
          %v833 = vmax.f32 %v746, 0.0
          %v834 = vmax.f32 %v748, 0.0
          %v835 = vmax.f32 %v751, 0.0
          %v836 = vmax.f32 %v753, 0.0
          %v837 = vmax.f32 %v756, 0.0
          %v838 = vmax.f32 %v758, 0.0
          %v839 = vmax.f32 %v761, 0.0
          %v840 = vmax.f32 %v763, 0.0
          %v841 = vmax.f32 %v766, 0.0
          %v842 = vmax.f32 %v768, 0.0
          %v843 = vmax.f32 %v771, 0.0
          %v844 = vmax.f32 %v773, 0.0
          %v845 = vmax.f32 %v776, 0.0
          %v846 = vmax.f32 %v778, 0.0
          %v847 = vmax.f32 %v781, 0.0
          %v848 = vmax.f32 %v783, 0.0
          %v849 = vmax.f32 %v786, 0.0
          %v850 = vmax.f32 %v788, 0.0
          %v851 = vmax.f32 %v791, 0.0
          %v852 = vmax.f32 %v793, 0.0
          %v853 = vmax.f32 %v796, 0.0
          %v854 = vmax.f32 %v798, 0.0
          %v855 = vmax.f32 %v801, 0.0
          %v856 = vmax.f32 %v803, 0.0
          %v857 = vmax.f32 %v806, 0.0
          %v858 = vld [vmem:[#allocation6] sm:$0xff]
          %v859 = vld [vmem:[#allocation6 + $0x8] sm:$0xff]
          %v860 = vld [vmem:[#allocation6 + $0x10] sm:$0xff]
          %v861 = vld [vmem:[#allocation6 + $0x18] sm:$0xff]
          %v862 = vld [vmem:[#allocation6 + $0x20] sm:$0xff]
          %v863 = vld [vmem:[#allocation6 + $0x28] sm:$0xff]
          %v864 = vld [vmem:[#allocation6 + $0x30] sm:$0xff]
          %v865 = vld [vmem:[#allocation6 + $0x38] sm:$0xff]
          %v866 = vld [vmem:[#allocation6 + $0x40] sm:$0xff]
          %v867 = vld [vmem:[#allocation6 + $0x48] sm:$0xff]
          %v868 = vld [vmem:[#allocation6 + $0x50] sm:$0xff]
          %v869 = vld [vmem:[#allocation6 + $0x58] sm:$0xff]
          %v870 = vld [vmem:[#allocation6 + $0x60] sm:$0xff]
          %v871 = vld [vmem:[#allocation6 + $0x68] sm:$0xff]
          %v872 = vld [vmem:[#allocation6 + $0x70] sm:$0xff]
          %v873 = vld [vmem:[#allocation6 + $0x78] sm:$0xff]
          %v874 = vld [vmem:[#allocation6 + $0x80] sm:$0xff]
          %v875 = vld [vmem:[#allocation6 + $0x88] sm:$0xff]
          %v876 = vld [vmem:[#allocation6 + $0x90] sm:$0xff]
          %v877 = vld [vmem:[#allocation6 + $0x98] sm:$0xff]
          %v878 = vld [vmem:[#allocation6 + $0xa0] sm:$0xff]
          %v879 = vld [vmem:[#allocation6 + $0xa8] sm:$0xff]
          %v880 = vld [vmem:[#allocation6 + $0xb0] sm:$0xff]
          %v881 = vld [vmem:[#allocation6 + $0xb8] sm:$0xff]
          %v882 = vld [vmem:[#allocation6 + $0xc0] sm:$0xff]
          %v883 = vld [vmem:[#allocation6 + $0xc8] sm:$0xff]
          %v884 = vld [vmem:[#allocation6 + $0xd0] sm:$0xff]
          %v885 = vld [vmem:[#allocation6 + $0xd8] sm:$0xff]
          %v886 = vpack.c.bf16 %v810, %v809
          %v887 = vpack.c.bf16 %v812, %v811
          %v888 = vpack.c.bf16 %v814, %v813
          %v889 = vpack.c.bf16 %v816, %v815
          %v890 = vpack.c.bf16 %v818, %v817
          %v891 = vpack.c.bf16 %v820, %v819
          %v892 = vpack.c.bf16 %v822, %v821
          %v893 = vpack.c.bf16 %v824, %v823
          %v894 = vpack.c.bf16 %v826, %v825
          %v895 = vpack.c.bf16 %v828, %v827
          %v896 = vpack.c.bf16 %v830, %v829
          %v897 = vpack.c.bf16 %v832, %v831
          %v898 = vpack.c.bf16 %v834, %v833
          %v899 = vpack.c.bf16 %v836, %v835
          %v900 = vpack.c.bf16 %v838, %v837
          %v901 = vpack.c.bf16 %v840, %v839
          %v902 = vpack.c.bf16 %v842, %v841
          %v903 = vpack.c.bf16 %v844, %v843
          %v904 = vpack.c.bf16 %v846, %v845
          %v905 = vpack.c.bf16 %v848, %v847
          %v906 = vpack.c.bf16 %v850, %v849
          %v907 = vpack.c.bf16 %v852, %v851
          %v908 = vpack.c.bf16 %v854, %v853
          %v909 = vpack.c.bf16 %v856, %v855
          %v910 = vpack.c.bf16 %v857, %v857
          %v939 = vunpack.c.l.b16 %v858
          %v940 = vunpack.c.h.b16 %v858
          %v941 = vunpack.c.l.b16 %v859
          %v942 = vunpack.c.h.b16 %v859
          %v943 = vunpack.c.l.b16 %v860
          %v944 = vunpack.c.h.b16 %v860
          %v945 = vunpack.c.l.b16 %v861
          %v946 = vunpack.c.h.b16 %v861
          %v947 = vunpack.c.l.b16 %v862
          %v948 = vunpack.c.h.b16 %v862
          %v949 = vunpack.c.l.b16 %v863
          %v950 = vunpack.c.h.b16 %v863
          %v951 = vunpack.c.l.b16 %v864
          %v952 = vunpack.c.h.b16 %v864
          %v953 = vunpack.c.l.b16 %v865
          %v954 = vunpack.c.h.b16 %v865
          %v955 = vunpack.c.l.b16 %v866
          %v956 = vunpack.c.h.b16 %v866
          %v957 = vunpack.c.l.b16 %v867
          %v958 = vunpack.c.h.b16 %v867
          %v959 = vunpack.c.l.b16 %v868
          %v960 = vunpack.c.h.b16 %v868
          %v961 = vunpack.c.l.b16 %v869
          %v962 = vunpack.c.h.b16 %v869
          %v963 = vunpack.c.l.b16 %v870
          %v964 = vunpack.c.h.b16 %v870
          %v965 = vunpack.c.l.b16 %v871
          %v966 = vunpack.c.h.b16 %v871
          %v967 = vunpack.c.l.b16 %v872
          %v968 = vunpack.c.h.b16 %v872
          %v969 = vunpack.c.l.b16 %v873
          %v970 = vunpack.c.h.b16 %v873
          %v971 = vunpack.c.l.b16 %v874
          %v972 = vunpack.c.h.b16 %v874
          %v973 = vunpack.c.l.b16 %v875
          %v974 = vunpack.c.h.b16 %v875
          %v975 = vunpack.c.l.b16 %v876
          %v976 = vunpack.c.h.b16 %v876
          %v977 = vunpack.c.l.b16 %v877
          %v978 = vunpack.c.h.b16 %v877
          %v979 = vunpack.c.l.b16 %v878
          %v980 = vunpack.c.h.b16 %v878
          %v981 = vunpack.c.l.b16 %v879
          %v982 = vunpack.c.h.b16 %v879
          %v983 = vunpack.c.l.b16 %v880
          %v984 = vunpack.c.h.b16 %v880
          %v985 = vunpack.c.l.b16 %v881
          %v986 = vunpack.c.h.b16 %v881
          %v987 = vunpack.c.l.b16 %v882
          %v988 = vunpack.c.h.b16 %v882
          %v989 = vunpack.c.l.b16 %v883
          %v990 = vunpack.c.h.b16 %v883
          %v991 = vunpack.c.l.b16 %v884
          %v992 = vunpack.c.h.b16 %v884
          %v993 = vunpack.c.l.b16 %v885
          %v994 = vunpack.c.h.b16 %v885
          %v995 = vpack.c.b16 %v943, %v939
          %v996 = vpack.c.b16 %v944, %v940
          %v997 = vpack.c.b16 %v945, %v941
          %v998 = vpack.c.b16 %v946, %v942
          %v999 = vpack.c.b16 %v951, %v947
          %v1000 = vpack.c.b16 %v952, %v948
          %v1001 = vpack.c.b16 %v953, %v949
          %v1002 = vpack.c.b16 %v954, %v950
          %v1003 = vpack.c.b16 %v959, %v955
          %v1004 = vpack.c.b16 %v960, %v956
          %v1005 = vpack.c.b16 %v961, %v957
          %v1006 = vpack.c.b16 %v962, %v958
          %v1007 = vpack.c.b16 %v967, %v963
          %v1008 = vpack.c.b16 %v968, %v964
          %v1009 = vpack.c.b16 %v969, %v965
          %v1010 = vpack.c.b16 %v970, %v966
          %v1011 = vpack.c.b16 %v975, %v971
          %v1012 = vpack.c.b16 %v976, %v972
          %v1013 = vpack.c.b16 %v977, %v973
          %v1014 = vpack.c.b16 %v978, %v974
          %v1015 = vpack.c.b16 %v983, %v979
          %v1016 = vpack.c.b16 %v984, %v980
          %v1017 = vpack.c.b16 %v985, %v981
          %v1018 = vpack.c.b16 %v986, %v982
          %v1019 = vpack.c.b16 %v991, %v987
          %v1020 = vpack.c.b16 %v992, %v988
          %v1021 = vpack.c.b16 %v993, %v989
          %v1022 = vpack.c.b16 %v994, %v990
          %vm1044 = vcmask 64512
          %v1046 = vsel %vm1044, %v998, 0
          %v1049 = vsel %vm1044, %v1002, 0
          %v1052 = vsel %vm1044, %v1006, 0
          %v1055 = vsel %vm1044, %v1010, 0
          %v1058 = vsel %vm1044, %v1014, 0
          %v1061 = vsel %vm1044, %v1018, 0
          %v1064 = vsel %vm1044, %v1022, 0
          %vm1066 = vcmask 1043456
          %v1068 = vsel %vm1066, %v910, 0
          %1070 = vmatpush.bf16.msra.mxu0 %v893
          %1071 = vmatpush.bf16.msra.mxu0 %v892
          %1072 = vmatpush.bf16.msra.mxu0 %v891
          %1073 = vmatpush.bf16.msra.mxu0 %v890
          %1074 = vmatpush.bf16.msra.mxu0 %v889
          %1075 = vmatpush.bf16.msra.mxu0 %v888
          %1076 = vmatpush.bf16.msra.mxu0 %v887
          %1077 = vmatpush.bf16.msra.mxu0 %v886
          %1078 = vmatmul.bf16.gmra.mxu0 %v995
          %v1079 = vpop.f32.mrf.mxu0
          %v1080 = vadd.f32 0.0, %v1079
          %v1081 = vpop.f32.mrf.mxu0
          %v1082 = vadd.f32 0.0, %v1081
          %1083 = vmatmul.bf16.gmra.mxu0 %v999
          %v1084 = vpop.f32.mrf.mxu0
          %v1085 = vadd.f32 0.0, %v1084
          %v1086 = vpop.f32.mrf.mxu0
          %v1087 = vadd.f32 0.0, %v1086
          %1088 = vmatmul.bf16.gmra.mxu0 %v1003
          %v1089 = vpop.f32.mrf.mxu0
          %v1090 = vadd.f32 0.0, %v1089
          %v1091 = vpop.f32.mrf.mxu0
          %v1092 = vadd.f32 0.0, %v1091
          %1093 = vmatmul.bf16.gmra.mxu0 %v1007
          %v1094 = vpop.f32.mrf.mxu0
          %v1095 = vadd.f32 0.0, %v1094
          %v1096 = vpop.f32.mrf.mxu0
          %v1097 = vadd.f32 0.0, %v1096
          %1098 = vmatmul.bf16.gmra.mxu0 %v1011
          %v1099 = vpop.f32.mrf.mxu0
          %v1100 = vadd.f32 0.0, %v1099
          %v1101 = vpop.f32.mrf.mxu0
          %v1102 = vadd.f32 0.0, %v1101
          %1103 = vmatmul.bf16.gmra.mxu0 %v1015
          %v1104 = vpop.f32.mrf.mxu0
          %v1105 = vadd.f32 0.0, %v1104
          %v1106 = vpop.f32.mrf.mxu0
          %v1107 = vadd.f32 0.0, %v1106
          %1108 = vmatmul.bf16.gmra.mxu0 %v1019
          %v1109 = vpop.f32.mrf.mxu0
          %v1110 = vadd.f32 0.0, %v1109
          %v1111 = vpop.f32.mrf.mxu0
          %v1112 = vadd.f32 0.0, %v1111
          %1113 = vdwg.mxu0
          %1114 = vmatpush.bf16.msra.mxu0 %v901
          %1115 = vmatpush.bf16.msra.mxu0 %v900
          %1116 = vmatpush.bf16.msra.mxu0 %v899
          %1117 = vmatpush.bf16.msra.mxu0 %v898
          %1118 = vmatpush.bf16.msra.mxu0 %v897
          %1119 = vmatpush.bf16.msra.mxu0 %v896
          %1120 = vmatpush.bf16.msra.mxu0 %v895
          %1121 = vmatpush.bf16.msra.mxu0 %v894
          %1122 = vmatmul.bf16.gmra.mxu0 %v996
          %v1123 = vpop.f32.mrf.mxu0
          %v1124 = vadd.f32 %v1080, %v1123
          %v1125 = vpop.f32.mrf.mxu0
          %v1126 = vadd.f32 %v1082, %v1125
          %1127 = vmatmul.bf16.gmra.mxu0 %v1000
          %v1128 = vpop.f32.mrf.mxu0
          %v1129 = vadd.f32 %v1085, %v1128
          %v1130 = vpop.f32.mrf.mxu0
          %v1131 = vadd.f32 %v1087, %v1130
          %1132 = vmatmul.bf16.gmra.mxu0 %v1004
          %v1133 = vpop.f32.mrf.mxu0
          %v1134 = vadd.f32 %v1090, %v1133
          %v1135 = vpop.f32.mrf.mxu0
          %v1136 = vadd.f32 %v1092, %v1135
          %1137 = vmatmul.bf16.gmra.mxu0 %v1008
          %v1138 = vpop.f32.mrf.mxu0
          %v1139 = vadd.f32 %v1095, %v1138
          %v1140 = vpop.f32.mrf.mxu0
          %v1141 = vadd.f32 %v1097, %v1140
          %1142 = vmatmul.bf16.gmra.mxu0 %v1012
          %v1143 = vpop.f32.mrf.mxu0
          %v1144 = vadd.f32 %v1100, %v1143
          %v1145 = vpop.f32.mrf.mxu0
          %v1146 = vadd.f32 %v1102, %v1145
          %1147 = vmatmul.bf16.gmra.mxu0 %v1016
          %v1148 = vpop.f32.mrf.mxu0
          %v1149 = vadd.f32 %v1105, %v1148
          %v1150 = vpop.f32.mrf.mxu0
          %v1151 = vadd.f32 %v1107, %v1150
          %1152 = vmatmul.bf16.gmra.mxu0 %v1020
          %v1153 = vpop.f32.mrf.mxu0
          %v1154 = vadd.f32 %v1110, %v1153
          %v1155 = vpop.f32.mrf.mxu0
          %v1156 = vadd.f32 %v1112, %v1155
          %1157 = vdwg.mxu0
          %1158 = vmatpush.bf16.msra.mxu0 %v909
          %1159 = vmatpush.bf16.msra.mxu0 %v908
          %1160 = vmatpush.bf16.msra.mxu0 %v907
          %1161 = vmatpush.bf16.msra.mxu0 %v906
          %1162 = vmatpush.bf16.msra.mxu0 %v905
          %1163 = vmatpush.bf16.msra.mxu0 %v904
          %1164 = vmatpush.bf16.msra.mxu0 %v903
          %1165 = vmatpush.bf16.msra.mxu0 %v902
          %1166 = vmatmul.bf16.gmra.mxu0 %v997
          %v1167 = vpop.f32.mrf.mxu0
          %v1168 = vadd.f32 %v1124, %v1167
          %v1169 = vpop.f32.mrf.mxu0
          %v1170 = vadd.f32 %v1126, %v1169
          %1171 = vmatmul.bf16.gmra.mxu0 %v1001
          %v1172 = vpop.f32.mrf.mxu0
          %v1173 = vadd.f32 %v1129, %v1172
          %v1174 = vpop.f32.mrf.mxu0
          %v1175 = vadd.f32 %v1131, %v1174
          %1176 = vmatmul.bf16.gmra.mxu0 %v1005
          %v1177 = vpop.f32.mrf.mxu0
          %v1178 = vadd.f32 %v1134, %v1177
          %v1179 = vpop.f32.mrf.mxu0
          %v1180 = vadd.f32 %v1136, %v1179
          %1181 = vmatmul.bf16.gmra.mxu0 %v1009
          %v1182 = vpop.f32.mrf.mxu0
          %v1183 = vadd.f32 %v1139, %v1182
          %v1184 = vpop.f32.mrf.mxu0
          %v1185 = vadd.f32 %v1141, %v1184
          %1186 = vmatmul.bf16.gmra.mxu0 %v1013
          %v1187 = vpop.f32.mrf.mxu0
          %v1188 = vadd.f32 %v1144, %v1187
          %v1189 = vpop.f32.mrf.mxu0
          %v1190 = vadd.f32 %v1146, %v1189
          %1191 = vmatmul.bf16.gmra.mxu0 %v1017
          %v1192 = vpop.f32.mrf.mxu0
          %v1193 = vadd.f32 %v1149, %v1192
          %v1194 = vpop.f32.mrf.mxu0
          %v1195 = vadd.f32 %v1151, %v1194
          %1196 = vmatmul.bf16.gmra.mxu0 %v1021
          %v1197 = vpop.f32.mrf.mxu0
          %v1198 = vadd.f32 %v1154, %v1197
          %v1199 = vpop.f32.mrf.mxu0
          %v1200 = vadd.f32 %v1156, %v1199
          %1201 = vdwg.mxu0
          %1202 = vmatpush.bf16.msra.mxu0 0
          %1203 = vmatpush.bf16.msra.mxu0 0
          %1204 = vmatpush.bf16.msra.mxu0 0
          %1205 = vmatpush.bf16.msra.mxu0 0
          %1206 = vmatpush.bf16.msra.mxu0 0
          %1207 = vmatpush.bf16.msra.mxu0 0
          %1208 = vmatpush.bf16.msra.mxu0 0
          %1209 = vmatpush.bf16.msra.mxu0 %v1068
          %1210 = vmatmul.bf16.gmra.mxu0 %v1046
          %v1211 = vpop.f32.mrf.mxu0
          %v1212 = vadd.f32 %v1168, %v1211
          %v1213 = vpop.f32.mrf.mxu0
          %v1214 = vadd.f32 %v1170, %v1213
          %1215 = vmatmul.bf16.gmra.mxu0 %v1049
          %v1216 = vpop.f32.mrf.mxu0
          %v1217 = vadd.f32 %v1173, %v1216
          %v1218 = vpop.f32.mrf.mxu0
          %v1219 = vadd.f32 %v1175, %v1218
          %1220 = vmatmul.bf16.gmra.mxu0 %v1052
          %v1221 = vpop.f32.mrf.mxu0
          %v1222 = vadd.f32 %v1178, %v1221
          %v1223 = vpop.f32.mrf.mxu0
          %v1224 = vadd.f32 %v1180, %v1223
          %1225 = vmatmul.bf16.gmra.mxu0 %v1055
          %v1226 = vpop.f32.mrf.mxu0
          %v1227 = vadd.f32 %v1183, %v1226
          %v1228 = vpop.f32.mrf.mxu0
          %v1229 = vadd.f32 %v1185, %v1228
          %1230 = vmatmul.bf16.gmra.mxu0 %v1058
          %v1231 = vpop.f32.mrf.mxu0
          %v1232 = vadd.f32 %v1188, %v1231
          %v1233 = vpop.f32.mrf.mxu0
          %v1234 = vadd.f32 %v1190, %v1233
          %1235 = vmatmul.bf16.gmra.mxu0 %v1061
          %v1236 = vpop.f32.mrf.mxu0
          %v1237 = vadd.f32 %v1193, %v1236
          %v1238 = vpop.f32.mrf.mxu0
          %v1239 = vadd.f32 %v1195, %v1238
          %1240 = vmatmul.bf16.gmra.mxu0 %v1064
          %v1241 = vpop.f32.mrf.mxu0
          %v1242 = vadd.f32 %v1198, %v1241
          %v1243 = vpop.f32.mrf.mxu0
          %v1244 = vadd.f32 %v1200, %v1243
          %1245 = vdwg.mxu0
          %1246 = vst.msk [vmem:[#allocation2] sm:$0xff] %vm600, %v1212
          %1247 = vst.msk [vmem:[#allocation2 + $0x8] sm:$0xff] %vm600, %v1214
          %1248 = vst.msk [vmem:[#allocation2 + $0x10] sm:$0xff] %vm600, %v1217
          %1249 = vst.msk [vmem:[#allocation2 + $0x18] sm:$0xff] %vm600, %v1219
          %1250 = vst.msk [vmem:[#allocation2 + $0x20] sm:$0xff] %vm600, %v1222
          %1251 = vst.msk [vmem:[#allocation2 + $0x28] sm:$0xff] %vm600, %v1224
          %1252 = vst.msk [vmem:[#allocation2 + $0x30] sm:$0xff] %vm600, %v1227
          %1253 = vst.msk [vmem:[#allocation2 + $0x38] sm:$0xff] %vm600, %v1229
          %1254 = vst.msk [vmem:[#allocation2 + $0x40] sm:$0xff] %vm600, %v1232
          %1255 = vst.msk [vmem:[#allocation2 + $0x48] sm:$0xff] %vm600, %v1234
          %1256 = vst.msk [vmem:[#allocation2 + $0x50] sm:$0xff] %vm600, %v1237
          %1257 = vst.msk [vmem:[#allocation2 + $0x58] sm:$0xff] %vm600, %v1239
          %1258 = vst.msk [vmem:[#allocation2 + $0x60] sm:$0xff] %vm600, %v1242
          %1259 = vst.msk [vmem:[#allocation2 + $0x68] sm:$0xff] %vm600, %v1244
          %1260 = vst [vmem:[#allocation3] sm:$0xff] 0.0
          %1261 = vst [vmem:[#allocation3 + $0x8] sm:$0xff] 0.0
        $region72: #{hkl_forward.1} parent=63 // pred_fallthru
          _
        %s1262 = smul.u32 %s32, 16
        %s1263 = scalar_lea.vmem [#allocation2], %s1262
        %v1264 = vld [vmem:[%s1263] sm:$0xff]
        %v1265 = vld [vmem:[%s1263 + $0x8] sm:$0xff]
        %v1266 = vpack.c.bf16 %v1264, %v1264
        %v1267 = vld [vmem:[%s401] sm:$0xff]
        %v1268 = vld [vmem:[%s401 + $0x8] sm:$0xff]
        %v1269 = vld [vmem:[%s401 + $0x10] sm:$0xff]
        %v1270 = vld [vmem:[%s401 + $0x18] sm:$0xff]
        %v1271 = vld [vmem:[%s401 + $0x20] sm:$0xff]
        %v1272 = vld [vmem:[%s401 + $0x28] sm:$0xff]
        %v1273 = vld [vmem:[%s401 + $0x30] sm:$0xff]
        %v1274 = vld [vmem:[%s401 + $0x38] sm:$0xff]
        %v1276 = vrot.slane %v1266, 1
        %v1281 = vunpack.c.l.b16 %v1271
        %v1282 = vunpack.c.h.b16 %v1271
        %v1283 = vunpack.c.l.b16 %v1272
        %v1284 = vunpack.c.h.b16 %v1272
        %v1285 = vunpack.c.l.b16 %v1273
        %v1286 = vunpack.c.h.b16 %v1273
        %v1287 = vunpack.c.l.b16 %v1274
        %v1288 = vunpack.c.h.b16 %v1274
        %v1289 = vpack.c.b16 %v1283, %v1281
        %v1290 = vpack.c.b16 %v1284, %v1282
        %v1291 = vpack.c.b16 %v1287, %v1285
        %v1292 = vpack.c.b16 %v1288, %v1286
        %vm1297 = vcmask 261120
        %v1299 = vsel %vm1297, %v1276, 0
        %1301 = vmatpush.bf16.msra.mxu0 0
        %1302 = vmatpush.bf16.msra.mxu0 0
        %1303 = vmatpush.bf16.msra.mxu0 0
        %1304 = vmatpush.bf16.msra.mxu0 0
        %1305 = vmatpush.bf16.msra.mxu0 0
        %1306 = vmatpush.bf16.msra.mxu0 0
        %1307 = vmatpush.bf16.msra.mxu0 %v1291
        %1308 = vmatpush.bf16.msra.mxu0 %v1289
        %1309 = vmatmul.bf16.gmra.mxu0 %v1299
        %v1310 = vpop.f32.mrf.mxu0
        %v1311 = vadd.f32 0.0, %v1310
        %v1312 = vpop.f32.mrf.mxu0
        %1313 = vdwg.mxu0
        %1314 = vmatpush.bf16.msra.mxu0 0
        %1315 = vmatpush.bf16.msra.mxu0 0
        %1316 = vmatpush.bf16.msra.mxu0 0
        %1317 = vmatpush.bf16.msra.mxu0 0
        %1318 = vmatpush.bf16.msra.mxu0 0
        %1319 = vmatpush.bf16.msra.mxu0 0
        %1320 = vmatpush.bf16.msra.mxu0 %v1292
        %1321 = vmatpush.bf16.msra.mxu0 %v1290
        %1322 = vmatmul.bf16.gmra.mxu0 %v1299
        %v1323 = vpop.f32.mrf.mxu0
        %v1324 = vadd.f32 0.0, %v1323
        %v1325 = vpop.f32.mrf.mxu0
        %1326 = vdwg.mxu0
        %v1331 = vunpack.c.l.b16 %v1267
        %v1332 = vunpack.c.h.b16 %v1267
        %v1333 = vunpack.c.l.b16 %v1268
        %v1334 = vunpack.c.h.b16 %v1268
        %v1335 = vunpack.c.l.b16 %v1269
        %v1336 = vunpack.c.h.b16 %v1269
        %v1337 = vunpack.c.l.b16 %v1270
        %v1338 = vunpack.c.h.b16 %v1270
        %v1339 = vpack.c.b16 %v1333, %v1331
        %v1340 = vpack.c.b16 %v1334, %v1332
        %v1341 = vpack.c.b16 %v1337, %v1335
        %v1342 = vpack.c.b16 %v1338, %v1336
        %v1348 = vsel %vm1297, %v1266, 0
        %1350 = vmatpush.bf16.msra.mxu0 0
        %1351 = vmatpush.bf16.msra.mxu0 0
        %1352 = vmatpush.bf16.msra.mxu0 0
        %1353 = vmatpush.bf16.msra.mxu0 0
        %1354 = vmatpush.bf16.msra.mxu0 0
        %1355 = vmatpush.bf16.msra.mxu0 0
        %1356 = vmatpush.bf16.msra.mxu0 %v1341
        %1357 = vmatpush.bf16.msra.mxu0 %v1339
        %1358 = vmatmul.bf16.gmra.mxu0 %v1348
        %v1359 = vpop.f32.mrf.mxu0
        %v1360 = vadd.f32 %v1311, %v1359
        %v1361 = vpop.f32.mrf.mxu0
        %1362 = vdwg.mxu0
        %1363 = vmatpush.bf16.msra.mxu0 0
        %1364 = vmatpush.bf16.msra.mxu0 0
        %1365 = vmatpush.bf16.msra.mxu0 0
        %1366 = vmatpush.bf16.msra.mxu0 0
        %1367 = vmatpush.bf16.msra.mxu0 0
        %1368 = vmatpush.bf16.msra.mxu0 0
        %1369 = vmatpush.bf16.msra.mxu0 %v1342
        %1370 = vmatpush.bf16.msra.mxu0 %v1340
        %1371 = vmatmul.bf16.gmra.mxu0 %v1348
        %v1372 = vpop.f32.mrf.mxu0
        %v1373 = vadd.f32 %v1324, %v1372
        %v1374 = vpop.f32.mrf.mxu0
        %1375 = vdwg.mxu0
        %v1376 = vld [vmem:[%s401 + $0x40] sm:$0xff]
        %v1377 = vld [vmem:[%s401 + $0x48] sm:$0xff]
        %v1378 = vld [vmem:[%s401 + $0x50] sm:$0xff]
        %v1379 = vld [vmem:[%s401 + $0x58] sm:$0xff]
        %v1380 = vrot.slane %v1266, 2
        %v1385 = vunpack.c.l.b16 %v1376
        %v1386 = vunpack.c.h.b16 %v1376
        %v1387 = vunpack.c.l.b16 %v1377
        %v1388 = vunpack.c.h.b16 %v1377
        %v1389 = vunpack.c.l.b16 %v1378
        %v1390 = vunpack.c.h.b16 %v1378
        %v1391 = vunpack.c.l.b16 %v1379
        %v1392 = vunpack.c.h.b16 %v1379
        %v1393 = vpack.c.b16 %v1387, %v1385
        %v1394 = vpack.c.b16 %v1388, %v1386
        %v1395 = vpack.c.b16 %v1391, %v1389
        %v1396 = vpack.c.b16 %v1392, %v1390
        %v1402 = vsel %vm1297, %v1380, 0
        %1404 = vmatpush.bf16.msra.mxu0 0
        %1405 = vmatpush.bf16.msra.mxu0 0
        %1406 = vmatpush.bf16.msra.mxu0 0
        %1407 = vmatpush.bf16.msra.mxu0 0
        %1408 = vmatpush.bf16.msra.mxu0 0
        %1409 = vmatpush.bf16.msra.mxu0 0
        %1410 = vmatpush.bf16.msra.mxu0 %v1395
        %1411 = vmatpush.bf16.msra.mxu0 %v1393
        %1412 = vmatmul.bf16.gmra.mxu0 %v1402
        %v1413 = vpop.f32.mrf.mxu0
        %v1414 = vadd.f32 0.0, %v1413
        %v1415 = vpop.f32.mrf.mxu0
        %1416 = vdwg.mxu0
        %1417 = vmatpush.bf16.msra.mxu0 0
        %1418 = vmatpush.bf16.msra.mxu0 0
        %1419 = vmatpush.bf16.msra.mxu0 0
        %1420 = vmatpush.bf16.msra.mxu0 0
        %1421 = vmatpush.bf16.msra.mxu0 0
        %1422 = vmatpush.bf16.msra.mxu0 0
        %1423 = vmatpush.bf16.msra.mxu0 %v1396
        %1424 = vmatpush.bf16.msra.mxu0 %v1394
        %1425 = vmatmul.bf16.gmra.mxu0 %v1402
        %v1426 = vpop.f32.mrf.mxu0
        %v1427 = vadd.f32 0.0, %v1426
        %v1428 = vpop.f32.mrf.mxu0
        %1429 = vdwg.mxu0
        %v1430 = vadd.f32 %v1360, %v1414
        %v1431 = vadd.f32 %v1373, %v1427
        %v1432 = vld [vmem:[%s401 + $0x60] sm:$0xff]
        %v1433 = vld [vmem:[%s401 + $0x68] sm:$0xff]
        %v1434 = vld [vmem:[%s401 + $0x70] sm:$0xff]
        %v1435 = vld [vmem:[%s401 + $0x78] sm:$0xff]
        %v1436 = vrot.slane %v1266, 3
        %v1441 = vunpack.c.l.b16 %v1432
        %v1442 = vunpack.c.h.b16 %v1432
        %v1443 = vunpack.c.l.b16 %v1433
        %v1444 = vunpack.c.h.b16 %v1433
        %v1445 = vunpack.c.l.b16 %v1434
        %v1446 = vunpack.c.h.b16 %v1434
        %v1447 = vunpack.c.l.b16 %v1435
        %v1448 = vunpack.c.h.b16 %v1435
        %v1449 = vpack.c.b16 %v1443, %v1441
        %v1450 = vpack.c.b16 %v1444, %v1442
        %v1451 = vpack.c.b16 %v1447, %v1445
        %v1452 = vpack.c.b16 %v1448, %v1446
        %v1458 = vsel %vm1297, %v1436, 0
        %1460 = vmatpush.bf16.msra.mxu0 0
        %1461 = vmatpush.bf16.msra.mxu0 0
        %1462 = vmatpush.bf16.msra.mxu0 0
        %1463 = vmatpush.bf16.msra.mxu0 0
        %1464 = vmatpush.bf16.msra.mxu0 0
        %1465 = vmatpush.bf16.msra.mxu0 0
        %1466 = vmatpush.bf16.msra.mxu0 %v1451
        %1467 = vmatpush.bf16.msra.mxu0 %v1449
        %1468 = vmatmul.bf16.gmra.mxu0 %v1458
        %v1469 = vpop.f32.mrf.mxu0
        %v1470 = vadd.f32 0.0, %v1469
        %v1471 = vpop.f32.mrf.mxu0
        %1472 = vdwg.mxu0
        %1473 = vmatpush.bf16.msra.mxu0 0
        %1474 = vmatpush.bf16.msra.mxu0 0
        %1475 = vmatpush.bf16.msra.mxu0 0
        %1476 = vmatpush.bf16.msra.mxu0 0
        %1477 = vmatpush.bf16.msra.mxu0 0
        %1478 = vmatpush.bf16.msra.mxu0 0
        %1479 = vmatpush.bf16.msra.mxu0 %v1452
        %1480 = vmatpush.bf16.msra.mxu0 %v1450
        %1481 = vmatmul.bf16.gmra.mxu0 %v1458
        %v1482 = vpop.f32.mrf.mxu0
        %v1483 = vadd.f32 0.0, %v1482
        %v1484 = vpop.f32.mrf.mxu0
        %1485 = vdwg.mxu0
        %v1486 = vadd.f32 %v1430, %v1470
        %v1487 = vadd.f32 %v1431, %v1483
        %v1488 = vpack.c.bf16 %v1265, %v1265
        %v1489 = vld [vmem:[%s401 + $0x80] sm:$0xff]
        %v1490 = vld [vmem:[%s401 + $0x88] sm:$0xff]
        %v1491 = vld [vmem:[%s401 + $0x90] sm:$0xff]
        %v1492 = vld [vmem:[%s401 + $0x98] sm:$0xff]
        %v1497 = vunpack.c.l.b16 %v1489
        %v1498 = vunpack.c.h.b16 %v1489
        %v1499 = vunpack.c.l.b16 %v1490
        %v1500 = vunpack.c.h.b16 %v1490
        %v1501 = vunpack.c.l.b16 %v1491
        %v1502 = vunpack.c.h.b16 %v1491
        %v1503 = vunpack.c.l.b16 %v1492
        %v1504 = vunpack.c.h.b16 %v1492
        %v1505 = vpack.c.b16 %v1499, %v1497
        %v1506 = vpack.c.b16 %v1500, %v1498
        %v1507 = vpack.c.b16 %v1503, %v1501
        %v1508 = vpack.c.b16 %v1504, %v1502
        %v1514 = vsel %vm1297, %v1488, 0
        %1516 = vmatpush.bf16.msra.mxu0 0
        %1517 = vmatpush.bf16.msra.mxu0 0
        %1518 = vmatpush.bf16.msra.mxu0 0
        %1519 = vmatpush.bf16.msra.mxu0 0
        %1520 = vmatpush.bf16.msra.mxu0 0
        %1521 = vmatpush.bf16.msra.mxu0 0
        %1522 = vmatpush.bf16.msra.mxu0 %v1507
        %1523 = vmatpush.bf16.msra.mxu0 %v1505
        %1524 = vmatmul.bf16.gmra.mxu0 %v1514
        %v1525 = vpop.f32.mrf.mxu0
        %v1526 = vadd.f32 0.0, %v1525
        %v1527 = vpop.f32.mrf.mxu0
        %1528 = vdwg.mxu0
        %1529 = vmatpush.bf16.msra.mxu0 0
        %1530 = vmatpush.bf16.msra.mxu0 0
        %1531 = vmatpush.bf16.msra.mxu0 0
        %1532 = vmatpush.bf16.msra.mxu0 0
        %1533 = vmatpush.bf16.msra.mxu0 0
        %1534 = vmatpush.bf16.msra.mxu0 0
        %1535 = vmatpush.bf16.msra.mxu0 %v1508
        %1536 = vmatpush.bf16.msra.mxu0 %v1506
        %1537 = vmatmul.bf16.gmra.mxu0 %v1514
        %v1538 = vpop.f32.mrf.mxu0
        %v1539 = vadd.f32 0.0, %v1538
        %v1540 = vpop.f32.mrf.mxu0
        %1541 = vdwg.mxu0
        %v1542 = vadd.f32 %v1486, %v1526
        %v1543 = vadd.f32 %v1487, %v1539
        %v1544 = vld [vmem:[%s401 + $0xa0] sm:$0xff]
        %v1545 = vld [vmem:[%s401 + $0xa8] sm:$0xff]
        %v1546 = vld [vmem:[%s401 + $0xb0] sm:$0xff]
        %v1547 = vld [vmem:[%s401 + $0xb8] sm:$0xff]
        %v1549 = vrot.slane %v1488, 1
        %v1554 = vunpack.c.l.b16 %v1544
        %v1555 = vunpack.c.h.b16 %v1544
        %v1556 = vunpack.c.l.b16 %v1545
        %v1557 = vunpack.c.h.b16 %v1545
        %v1558 = vunpack.c.l.b16 %v1546
        %v1559 = vunpack.c.h.b16 %v1546
        %v1560 = vunpack.c.l.b16 %v1547
        %v1561 = vunpack.c.h.b16 %v1547
        %v1562 = vpack.c.b16 %v1556, %v1554
        %v1563 = vpack.c.b16 %v1557, %v1555
        %v1564 = vpack.c.b16 %v1560, %v1558
        %v1565 = vpack.c.b16 %v1561, %v1559
        %v1571 = vsel %vm1297, %v1549, 0
        %1573 = vmatpush.bf16.msra.mxu0 0
        %1574 = vmatpush.bf16.msra.mxu0 0
        %1575 = vmatpush.bf16.msra.mxu0 0
        %1576 = vmatpush.bf16.msra.mxu0 0
        %1577 = vmatpush.bf16.msra.mxu0 0
        %1578 = vmatpush.bf16.msra.mxu0 0
        %1579 = vmatpush.bf16.msra.mxu0 %v1564
        %1580 = vmatpush.bf16.msra.mxu0 %v1562
        %1581 = vmatmul.bf16.gmra.mxu0 %v1571
        %v1582 = vpop.f32.mrf.mxu0
        %v1583 = vadd.f32 0.0, %v1582
        %v1584 = vpop.f32.mrf.mxu0
        %1585 = vdwg.mxu0
        %1586 = vmatpush.bf16.msra.mxu0 0
        %1587 = vmatpush.bf16.msra.mxu0 0
        %1588 = vmatpush.bf16.msra.mxu0 0
        %1589 = vmatpush.bf16.msra.mxu0 0
        %1590 = vmatpush.bf16.msra.mxu0 0
        %1591 = vmatpush.bf16.msra.mxu0 0
        %1592 = vmatpush.bf16.msra.mxu0 %v1565
        %1593 = vmatpush.bf16.msra.mxu0 %v1563
        %1594 = vmatmul.bf16.gmra.mxu0 %v1571
        %v1595 = vpop.f32.mrf.mxu0
        %v1596 = vadd.f32 0.0, %v1595
        %v1597 = vpop.f32.mrf.mxu0
        %1598 = vdwg.mxu0
        %v1599 = vadd.f32 %v1542, %v1583
        %v1600 = vadd.f32 %v1543, %v1596
        %v1601 = vld [vmem:[%s401 + $0xc0] sm:$0xff]
        %v1602 = vld [vmem:[%s401 + $0xc8] sm:$0xff]
        %v1603 = vld [vmem:[%s401 + $0xd0] sm:$0xff]
        %v1604 = vld [vmem:[%s401 + $0xd8] sm:$0xff]
        %v1605 = vrot.slane %v1488, 2
        %v1610 = vunpack.c.l.b16 %v1601
        %v1611 = vunpack.c.h.b16 %v1601
        %v1612 = vunpack.c.l.b16 %v1602
        %v1613 = vunpack.c.h.b16 %v1602
        %v1614 = vunpack.c.l.b16 %v1603
        %v1615 = vunpack.c.h.b16 %v1603
        %v1616 = vunpack.c.l.b16 %v1604
        %v1617 = vunpack.c.h.b16 %v1604
        %v1618 = vpack.c.b16 %v1612, %v1610
        %v1619 = vpack.c.b16 %v1613, %v1611
        %v1620 = vpack.c.b16 %v1616, %v1614
        %v1621 = vpack.c.b16 %v1617, %v1615
        %v1627 = vsel %vm1297, %v1605, 0
        %1629 = vmatpush.bf16.msra.mxu0 0
        %1630 = vmatpush.bf16.msra.mxu0 0
        %1631 = vmatpush.bf16.msra.mxu0 0
        %1632 = vmatpush.bf16.msra.mxu0 0
        %1633 = vmatpush.bf16.msra.mxu0 0
        %1634 = vmatpush.bf16.msra.mxu0 0
        %1635 = vmatpush.bf16.msra.mxu0 %v1620
        %1636 = vmatpush.bf16.msra.mxu0 %v1618
        %1637 = vmatmul.bf16.gmra.mxu0 %v1627
        %v1638 = vpop.f32.mrf.mxu0
        %v1639 = vadd.f32 0.0, %v1638
        %v1640 = vpop.f32.mrf.mxu0
        %1641 = vdwg.mxu0
        %1642 = vmatpush.bf16.msra.mxu0 0
        %1643 = vmatpush.bf16.msra.mxu0 0
        %1644 = vmatpush.bf16.msra.mxu0 0
        %1645 = vmatpush.bf16.msra.mxu0 0
        %1646 = vmatpush.bf16.msra.mxu0 0
        %1647 = vmatpush.bf16.msra.mxu0 0
        %1648 = vmatpush.bf16.msra.mxu0 %v1621
        %1649 = vmatpush.bf16.msra.mxu0 %v1619
        %1650 = vmatmul.bf16.gmra.mxu0 %v1627
        %v1651 = vpop.f32.mrf.mxu0
        %v1652 = vadd.f32 0.0, %v1651
        %v1653 = vpop.f32.mrf.mxu0
        %1654 = vdwg.mxu0
        %v1655 = vadd.f32 %v1599, %v1639
        %v1656 = vadd.f32 %v1600, %v1652
        %v1657 = vld [vmem:[#allocation3] sm:$0xff]
        %v1658 = vld [vmem:[#allocation3 + $0x8] sm:$0xff]
        %vm1659 = vcmask 1041408
        %v1660 = vsel %vm1659, %v1655, 0.0
        %v1661 = vsel %vm1659, %v1656, 0.0
        %v1662 = vadd.f32 %v1657, %v1660
        %v1663 = vadd.f32 %v1658, %v1661
        %1664 = vst [vmem:[#allocation3] sm:$0xff] %v1662
        %1665 = vst [vmem:[#allocation3 + $0x8] sm:$0xff] %v1663
        %p1666 = scmp.eq.s32.totalorder %s32, 6
        // Predicated region
        $region73: #{hkl_forward.1} parent=63 // pred_check
          %p1667 = pneg %p1666
        $region74: #{hkl_forward.1} parent=63 // pred_check_branch
          %1669 = sbr.rel (%p1667) target = $region76
        $region75: #{hkl_forward.1} parent=63 // pred_region
          %v1670 = vld [vmem:[#allocation3] sm:$0xff]
          %v1671 = vld [vmem:[#allocation3 + $0x8] sm:$0xff]
          %v1672 = vld [vmem:[%s6] sm:$0x3]
          %v1674 = vperm.slane %v1672, 0
          %v1675 = vperm.slane %v1672, 1
          %v1678 = vadd.f32 %v1670, %v1674
          %v1679 = vadd.f32 %v1671, %v1675
          %v1680 = vmax.f32 %v1678, 0.0
          %v1681 = vmax.f32 %v1679, 0.0
          %v1682 = vpack.c.bf16 %v1680, %v1680
          %v1683 = vpack.c.bf16 %v1681, %v1681
          %v1684 = vld [vmem:[%s7] sm:$0xff]
          %v1685 = vld [vmem:[%s7 + $0x8] sm:$0xff]
          %v1686 = vld [vmem:[%s7 + $0x10] sm:$0xff]
          %v1687 = vld [vmem:[%s7 + $0x18] sm:$0xff]
          %v1688 = vld [vmem:[%s7 + $0x20] sm:$0xff]
          %v1689 = vld [vmem:[%s7 + $0x28] sm:$0xff]
          %v1690 = vld [vmem:[%s7 + $0x30] sm:$0xff]
          %v1691 = vld [vmem:[%s7 + $0x38] sm:$0xff]
          %v1692 = vld [vmem:[%s7 + $0x40] sm:$0xff]
          %v1693 = vld [vmem:[%s7 + $0x48] sm:$0xff]
          %v1694 = vld [vmem:[%s7 + $0x50] sm:$0xff]
          %v1695 = vld [vmem:[%s7 + $0x58] sm:$0xff]
          %v1696 = vld [vmem:[%s7 + $0x60] sm:$0xff]
          %v1697 = vld [vmem:[%s7 + $0x68] sm:$0xff]
          %v1698 = vld [vmem:[%s7 + $0x70] sm:$0xff]
          %v1699 = vld [vmem:[%s7 + $0x78] sm:$0xff]
          %v1700 = vld [vmem:[%s7 + $0x80] sm:$0xff]
          %v1701 = vld [vmem:[%s7 + $0x88] sm:$0xff]
          %v1702 = vld [vmem:[%s7 + $0x90] sm:$0xff]
          %v1703 = vld [vmem:[%s7 + $0x98] sm:$0xff]
          %v1704 = vld [vmem:[%s7 + $0xa0] sm:$0xff]
          %v1705 = vld [vmem:[%s7 + $0xa8] sm:$0xff]
          %v1706 = vld [vmem:[%s7 + $0xb0] sm:$0xff]
          %v1707 = vld [vmem:[%s7 + $0xb8] sm:$0xff]
          %v1708 = vld [vmem:[%s7 + $0xc0] sm:$0xff]
          %v1709 = vld [vmem:[%s7 + $0xc8] sm:$0xff]
          %v1710 = vld [vmem:[%s7 + $0xd0] sm:$0xff]
          %v1711 = vld [vmem:[%s7 + $0xd8] sm:$0xff]
          %v1712 = vld [vmem:[%s7 + $0xe0] sm:$0xff]
          %v1713 = vld [vmem:[%s7 + $0xe8] sm:$0xff]
          %v1714 = vld [vmem:[%s7 + $0xf0] sm:$0xff]
          %v1715 = vld [vmem:[%s7 + $0xf8] sm:$0xff]
          %v1716 = vld [vmem:[%s8] sm:$0x3]
          %v1718 = vperm.slane %v1716, 0
          %v1719 = vperm.slane %v1716, 1
          %v1754 = vunpack.c.l.b16 %v1684
          %v1755 = vunpack.c.h.b16 %v1684
          %v1756 = vunpack.c.l.b16 %v1685
          %v1757 = vunpack.c.h.b16 %v1685
          %v1758 = vunpack.c.l.b16 %v1686
          %v1759 = vunpack.c.h.b16 %v1686
          %v1760 = vunpack.c.l.b16 %v1687
          %v1761 = vunpack.c.h.b16 %v1687
          %v1762 = vunpack.c.l.b16 %v1688
          %v1763 = vunpack.c.h.b16 %v1688
          %v1764 = vunpack.c.l.b16 %v1689
          %v1765 = vunpack.c.h.b16 %v1689
          %v1766 = vunpack.c.l.b16 %v1690
          %v1767 = vunpack.c.h.b16 %v1690
          %v1768 = vunpack.c.l.b16 %v1691
          %v1769 = vunpack.c.h.b16 %v1691
          %v1770 = vunpack.c.l.b16 %v1692
          %v1771 = vunpack.c.h.b16 %v1692
          %v1772 = vunpack.c.l.b16 %v1693
          %v1773 = vunpack.c.h.b16 %v1693
          %v1774 = vunpack.c.l.b16 %v1694
          %v1775 = vunpack.c.h.b16 %v1694
          %v1776 = vunpack.c.l.b16 %v1695
          %v1777 = vunpack.c.h.b16 %v1695
          %v1778 = vunpack.c.l.b16 %v1696
          %v1779 = vunpack.c.h.b16 %v1696
          %v1780 = vunpack.c.l.b16 %v1697
          %v1781 = vunpack.c.h.b16 %v1697
          %v1782 = vunpack.c.l.b16 %v1698
          %v1783 = vunpack.c.h.b16 %v1698
          %v1784 = vunpack.c.l.b16 %v1699
          %v1785 = vunpack.c.h.b16 %v1699
          %v1786 = vunpack.c.l.b16 %v1700
          %v1787 = vunpack.c.h.b16 %v1700
          %v1788 = vunpack.c.l.b16 %v1701
          %v1789 = vunpack.c.h.b16 %v1701
          %v1790 = vunpack.c.l.b16 %v1702
          %v1791 = vunpack.c.h.b16 %v1702
          %v1792 = vunpack.c.l.b16 %v1703
          %v1793 = vunpack.c.h.b16 %v1703
          %v1794 = vunpack.c.l.b16 %v1704
          %v1795 = vunpack.c.h.b16 %v1704
          %v1796 = vunpack.c.l.b16 %v1705
          %v1797 = vunpack.c.h.b16 %v1705
          %v1798 = vunpack.c.l.b16 %v1706
          %v1799 = vunpack.c.h.b16 %v1706
          %v1800 = vunpack.c.l.b16 %v1707
          %v1801 = vunpack.c.h.b16 %v1707
          %v1802 = vunpack.c.l.b16 %v1708
          %v1803 = vunpack.c.h.b16 %v1708
          %v1804 = vunpack.c.l.b16 %v1709
          %v1805 = vunpack.c.h.b16 %v1709
          %v1806 = vunpack.c.l.b16 %v1710
          %v1807 = vunpack.c.h.b16 %v1710
          %v1808 = vunpack.c.l.b16 %v1711
          %v1809 = vunpack.c.h.b16 %v1711
          %v1810 = vunpack.c.l.b16 %v1712
          %v1811 = vunpack.c.h.b16 %v1712
          %v1812 = vunpack.c.l.b16 %v1713
          %v1813 = vunpack.c.h.b16 %v1713
          %v1814 = vunpack.c.l.b16 %v1714
          %v1815 = vunpack.c.h.b16 %v1714
          %v1816 = vunpack.c.l.b16 %v1715
          %v1817 = vunpack.c.h.b16 %v1715
          %v1818 = vpack.c.b16 %v1756, %v1754
          %v1819 = vpack.c.b16 %v1757, %v1755
          %v1820 = vpack.c.b16 %v1760, %v1758
          %v1821 = vpack.c.b16 %v1761, %v1759
          %v1822 = vpack.c.b16 %v1764, %v1762
          %v1823 = vpack.c.b16 %v1765, %v1763
          %v1824 = vpack.c.b16 %v1768, %v1766
          %v1825 = vpack.c.b16 %v1769, %v1767
          %v1826 = vpack.c.b16 %v1772, %v1770
          %v1827 = vpack.c.b16 %v1773, %v1771
          %v1828 = vpack.c.b16 %v1776, %v1774
          %v1829 = vpack.c.b16 %v1777, %v1775
          %v1830 = vpack.c.b16 %v1780, %v1778
          %v1831 = vpack.c.b16 %v1781, %v1779
          %v1832 = vpack.c.b16 %v1784, %v1782
          %v1833 = vpack.c.b16 %v1785, %v1783
          %v1834 = vpack.c.b16 %v1788, %v1786
          %v1835 = vpack.c.b16 %v1789, %v1787
          %v1836 = vpack.c.b16 %v1792, %v1790
          %v1837 = vpack.c.b16 %v1793, %v1791
          %v1838 = vpack.c.b16 %v1796, %v1794
          %v1839 = vpack.c.b16 %v1797, %v1795
          %v1840 = vpack.c.b16 %v1800, %v1798
          %v1841 = vpack.c.b16 %v1801, %v1799
          %v1842 = vpack.c.b16 %v1804, %v1802
          %v1843 = vpack.c.b16 %v1805, %v1803
          %v1844 = vpack.c.b16 %v1808, %v1806
          %v1845 = vpack.c.b16 %v1809, %v1807
          %v1846 = vpack.c.b16 %v1812, %v1810
          %v1847 = vpack.c.b16 %v1813, %v1811
          %v1848 = vpack.c.b16 %v1816, %v1814
          %v1849 = vpack.c.b16 %v1817, %v1815
          %1882 = vmatpush.bf16.msra.mxu0 %v1832
          %1883 = vmatpush.bf16.msra.mxu0 %v1830
          %1884 = vmatpush.bf16.msra.mxu0 %v1828
          %1885 = vmatpush.bf16.msra.mxu0 %v1826
          %1886 = vmatpush.bf16.msra.mxu0 %v1824
          %1887 = vmatpush.bf16.msra.mxu0 %v1822
          %1888 = vmatpush.bf16.msra.mxu0 %v1820
          %1889 = vmatpush.bf16.msra.mxu0 %v1818
          %1890 = vmatmul.bf16.gmra.mxu0 %v1682
          %v1891 = vpop.f32.mrf.mxu0
          %v1892 = vadd.f32 %v1718, %v1891
          %v1893 = vpop.f32.mrf.mxu0
          %1894 = vdwg.mxu0
          %1895 = vmatpush.bf16.msra.mxu0 %v1848
          %1896 = vmatpush.bf16.msra.mxu0 %v1846
          %1897 = vmatpush.bf16.msra.mxu0 %v1844
          %1898 = vmatpush.bf16.msra.mxu0 %v1842
          %1899 = vmatpush.bf16.msra.mxu0 %v1840
          %1900 = vmatpush.bf16.msra.mxu0 %v1838
          %1901 = vmatpush.bf16.msra.mxu0 %v1836
          %1902 = vmatpush.bf16.msra.mxu0 %v1834
          %1903 = vmatmul.bf16.gmra.mxu0 %v1683
          %v1904 = vpop.f32.mrf.mxu0
          %v1905 = vadd.f32 %v1892, %v1904
          %v1906 = vpop.f32.mrf.mxu0
          %1907 = vdwg.mxu0
          %1908 = vmatpush.bf16.msra.mxu0 %v1833
          %1909 = vmatpush.bf16.msra.mxu0 %v1831
          %1910 = vmatpush.bf16.msra.mxu0 %v1829
          %1911 = vmatpush.bf16.msra.mxu0 %v1827
          %1912 = vmatpush.bf16.msra.mxu0 %v1825
          %1913 = vmatpush.bf16.msra.mxu0 %v1823
          %1914 = vmatpush.bf16.msra.mxu0 %v1821
          %1915 = vmatpush.bf16.msra.mxu0 %v1819
          %1916 = vmatmul.bf16.gmra.mxu0 %v1682
          %v1917 = vpop.f32.mrf.mxu0
          %v1918 = vadd.f32 %v1719, %v1917
          %v1919 = vpop.f32.mrf.mxu0
          %1920 = vdwg.mxu0
          %1921 = vmatpush.bf16.msra.mxu0 %v1849
          %1922 = vmatpush.bf16.msra.mxu0 %v1847
          %1923 = vmatpush.bf16.msra.mxu0 %v1845
          %1924 = vmatpush.bf16.msra.mxu0 %v1843
          %1925 = vmatpush.bf16.msra.mxu0 %v1841
          %1926 = vmatpush.bf16.msra.mxu0 %v1839
          %1927 = vmatpush.bf16.msra.mxu0 %v1837
          %1928 = vmatpush.bf16.msra.mxu0 %v1835
          %1929 = vmatmul.bf16.gmra.mxu0 %v1683
          %v1930 = vpop.f32.mrf.mxu0
          %v1931 = vadd.f32 %v1918, %v1930
          %v1932 = vpop.f32.mrf.mxu0
          %1933 = vdwg.mxu0
          %v1934 = vmax.f32 %v1905, 0.0
          %v1935 = vmax.f32 %v1931, 0.0
          %s1936 = sld [smem:[#allocation5]]
          %s1937 = sshra.s32 %s1936, 3
          %s1938 = sand.u32 %s1936, 7
          %s1939 = sshra.s32 %s1936, 3
          %s1940 = sand.u32 %s1936, 7
          %s1941 = smul.u32 %s1937, 2
          %s1942 = smul.u32 %s1941, 8
          %s1943 = sadd.s32 %s1942, %s1940
          %s1944 = scalar_lea.vmem %s9, %s1943
          %v1945 = vld [vmem:[%s1944] ss:$8 sm:$0x3]
          %s1946 = sld [smem:[#allocation5 + $0x80]]
          %s1947 = sadd.s32 %s1946, 8
          %s1948 = sshra.s32 %s1947, 3
          %s1949 = sand.u32 %s1947, 7
          %s1950 = sshra.s32 %s1947, 3
          %s1951 = sand.u32 %s1947, 7
          %s1952 = smul.u32 %s1948, 2
          %s1953 = smul.u32 %s1952, 8
          %s1954 = sadd.s32 %s1953, %s1951
          %s1955 = scalar_lea.vmem %s9, %s1954
          %v1956 = vld [vmem:[%s1955] ss:$8 sm:$0x3]
          %v1957 = vadd.f32 %v1945, %v1956
          %s1958 = sld [smem:[#allocation5 + $0x100]]
          %s1959 = sadd.s32 %s1958, 16
          %s1960 = sshra.s32 %s1959, 3
          %s1961 = sand.u32 %s1959, 7
          %s1962 = sshra.s32 %s1959, 3
          %s1963 = sand.u32 %s1959, 7
          %s1964 = smul.u32 %s1960, 2
          %s1965 = smul.u32 %s1964, 8
          %s1966 = sadd.s32 %s1965, %s1963
          %s1967 = scalar_lea.vmem %s9, %s1966
          %v1968 = vld [vmem:[%s1967] ss:$8 sm:$0x3]
          %v1969 = vadd.f32 %v1957, %v1968
          %s1970 = sld [smem:[#allocation5 + $0x1]]
          %s1971 = sshra.s32 %s1970, 3
          %s1972 = sand.u32 %s1970, 7
          %s1973 = sshra.s32 %s1970, 3
          %s1974 = sand.u32 %s1970, 7
          %s1975 = smul.u32 %s1971, 2
          %s1976 = smul.u32 %s1975, 8
          %s1977 = sadd.s32 %s1976, %s1974
          %s1978 = scalar_lea.vmem %s9, %s1977
          %v1979 = vld [vmem:[%s1978] ss:$8 sm:$0x3]
          %s1980 = sld [smem:[#allocation5 + $0x81]]
          %s1981 = sadd.s32 %s1980, 8
          %s1982 = sshra.s32 %s1981, 3
          %s1983 = sand.u32 %s1981, 7
          %s1984 = sshra.s32 %s1981, 3
          %s1985 = sand.u32 %s1981, 7
          %s1986 = smul.u32 %s1982, 2
          %s1987 = smul.u32 %s1986, 8
          %s1988 = sadd.s32 %s1987, %s1985
          %s1989 = scalar_lea.vmem %s9, %s1988
          %v1990 = vld [vmem:[%s1989] ss:$8 sm:$0x3]
          %v1991 = vadd.f32 %v1979, %v1990
          %s1992 = sld [smem:[#allocation5 + $0x101]]
          %s1993 = sadd.s32 %s1992, 16
          %s1994 = sshra.s32 %s1993, 3
          %s1995 = sand.u32 %s1993, 7
          %s1996 = sshra.s32 %s1993, 3
          %s1997 = sand.u32 %s1993, 7
          %s1998 = smul.u32 %s1994, 2
          %s1999 = smul.u32 %s1998, 8
          %s2000 = sadd.s32 %s1999, %s1997
          %s2001 = scalar_lea.vmem %s9, %s2000
          %v2002 = vld [vmem:[%s2001] ss:$8 sm:$0x3]
          %v2003 = vadd.f32 %v1991, %v2002
          %v2005 = vperm.slane %v1969, 0
          %v2006 = vperm.slane %v1969, 1
          %v2010 = vperm.slane %v2003, 0
          %v2011 = vperm.slane %v2003, 1
          %vm2014 = vcmask 1040384
          %v2015 = vsel %vm2014, %v2005, %v2010
          %v2016 = vsel %vm2014, %v2006, %v2011
          %v2017 = vxor.u32 %v2015, 2147483648
          %v2018 = vxor.u32 %v2016, 2147483648
          %v2019 = vmul.f32 %v2017, 1.442695
          %v2020 = vpow.pop %v2019
          %v2021 = vmul.f32 %v2018, 1.442695
          %v2022 = vpow.pop %v2021
          %v2023 = vadd.f32 %v2020, 1.0
          %v2024 = vadd.f32 %v2022, 1.0
          %v2025 = vrcp.pop %v2023
          %v2026 = vmul.f32 %v2023, %v2025
          %v2027 = vsub.f32 1.0, %v2026
          %v2028 = vmul.f32 %v2025, %v2027
          %v2029 = vadd.f32 %v2025, %v2028
          %vm2030 = vweird.f32 %v2023
          %vm2031 = vweird.f32 %v2025
          %vm2032 = vmor %vm2030, %vm2031
          %v2033 = vsel %vm2032, %v2025, %v2029
          %v2034 = vand.u32 2147483647, %v2023
          %vm2035 = vcmp.eq.f32.partialorder %v2034, 8.507059e+37
          %v2036 = vand.u32 %v2023, 2147483648
          %v2037 = vor.u32 1.1754944e-38, %v2036
          %v2038 = vsel %vm2035, %v2037, %v2033
          %v2039 = vmul.f32 1.0, %v2038
          %v2040 = vrcp.pop %v2024
          %v2041 = vmul.f32 %v2024, %v2040
          %v2042 = vsub.f32 1.0, %v2041
          %v2043 = vmul.f32 %v2040, %v2042
          %v2044 = vadd.f32 %v2040, %v2043
          %vm2045 = vweird.f32 %v2024
          %vm2046 = vweird.f32 %v2040
          %vm2047 = vmor %vm2045, %vm2046
          %v2048 = vsel %vm2047, %v2040, %v2044
          %v2049 = vand.u32 2147483647, %v2024
          %vm2050 = vcmp.eq.f32.partialorder %v2049, 8.507059e+37
          %v2051 = vand.u32 %v2024, 2147483648
          %v2052 = vor.u32 1.1754944e-38, %v2051
          %v2053 = vsel %vm2050, %v2052, %v2048
          %v2054 = vmul.f32 1.0, %v2053
          %v2055 = vsel %vm1659, %v2039, 0.0
          %v2056 = vsel %vm1659, %v2054, 0.0
          %v2057 = vmul.f32 %v1934, %v2055
          %v2058 = vmul.f32 %v1935, %v2056
          %v2059 = vpack.c.bf16 %v2057, %v2057
          %v2060 = vpack.c.bf16 %v2058, %v2058
          %v2061 = vld [vmem:[%s10] sm:$0xff]
          %v2062 = vld [vmem:[%s10 + $0x8] sm:$0xff]
          %v2063 = vld [vmem:[%s10 + $0x10] sm:$0xff]
          %v2064 = vld [vmem:[%s10 + $0x18] sm:$0xff]
          %v2065 = vld [vmem:[%s10 + $0x20] sm:$0xff]
          %v2066 = vld [vmem:[%s10 + $0x28] sm:$0xff]
          %v2067 = vld [vmem:[%s10 + $0x30] sm:$0xff]
          %v2068 = vld [vmem:[%s10 + $0x38] sm:$0xff]
          %v2069 = vld [vmem:[%s10 + $0x40] sm:$0xff]
          %v2070 = vld [vmem:[%s10 + $0x48] sm:$0xff]
          %v2071 = vld [vmem:[%s10 + $0x50] sm:$0xff]
          %v2072 = vld [vmem:[%s10 + $0x58] sm:$0xff]
          %v2073 = vld [vmem:[%s10 + $0x60] sm:$0xff]
          %v2074 = vld [vmem:[%s10 + $0x68] sm:$0xff]
          %v2075 = vld [vmem:[%s10 + $0x70] sm:$0xff]
          %v2076 = vld [vmem:[%s10 + $0x78] sm:$0xff]
          %v2077 = vld [vmem:[%s10 + $0x80] sm:$0xff]
          %v2078 = vld [vmem:[%s10 + $0x88] sm:$0xff]
          %v2079 = vld [vmem:[%s10 + $0x90] sm:$0xff]
          %v2080 = vld [vmem:[%s10 + $0x98] sm:$0xff]
          %v2081 = vld [vmem:[%s10 + $0xa0] sm:$0xff]
          %v2082 = vld [vmem:[%s10 + $0xa8] sm:$0xff]
          %v2083 = vld [vmem:[%s10 + $0xb0] sm:$0xff]
          %v2084 = vld [vmem:[%s10 + $0xb8] sm:$0xff]
          %v2085 = vld [vmem:[%s10 + $0xc0] sm:$0xff]
          %v2086 = vld [vmem:[%s10 + $0xc8] sm:$0xff]
          %v2087 = vld [vmem:[%s10 + $0xd0] sm:$0xff]
          %v2088 = vld [vmem:[%s10 + $0xd8] sm:$0xff]
          %v2089 = vld [vmem:[%s10 + $0xe0] sm:$0xff]
          %v2090 = vld [vmem:[%s10 + $0xe8] sm:$0xff]
          %v2091 = vld [vmem:[%s10 + $0xf0] sm:$0xff]
          %v2092 = vld [vmem:[%s10 + $0xf8] sm:$0xff]
          %v2093 = vld [vmem:[%s11] sm:$0x3]
          %v2095 = vperm.slane %v2093, 0
          %v2096 = vperm.slane %v2093, 1
          %v2131 = vunpack.c.l.b16 %v2061
          %v2132 = vunpack.c.h.b16 %v2061
          %v2133 = vunpack.c.l.b16 %v2062
          %v2134 = vunpack.c.h.b16 %v2062
          %v2135 = vunpack.c.l.b16 %v2063
          %v2136 = vunpack.c.h.b16 %v2063
          %v2137 = vunpack.c.l.b16 %v2064
          %v2138 = vunpack.c.h.b16 %v2064
          %v2139 = vunpack.c.l.b16 %v2065
          %v2140 = vunpack.c.h.b16 %v2065
          %v2141 = vunpack.c.l.b16 %v2066
          %v2142 = vunpack.c.h.b16 %v2066
          %v2143 = vunpack.c.l.b16 %v2067
          %v2144 = vunpack.c.h.b16 %v2067
          %v2145 = vunpack.c.l.b16 %v2068
          %v2146 = vunpack.c.h.b16 %v2068
          %v2147 = vunpack.c.l.b16 %v2069
          %v2148 = vunpack.c.h.b16 %v2069
          %v2149 = vunpack.c.l.b16 %v2070
          %v2150 = vunpack.c.h.b16 %v2070
          %v2151 = vunpack.c.l.b16 %v2071
          %v2152 = vunpack.c.h.b16 %v2071
          %v2153 = vunpack.c.l.b16 %v2072
          %v2154 = vunpack.c.h.b16 %v2072
          %v2155 = vunpack.c.l.b16 %v2073
          %v2156 = vunpack.c.h.b16 %v2073
          %v2157 = vunpack.c.l.b16 %v2074
          %v2158 = vunpack.c.h.b16 %v2074
          %v2159 = vunpack.c.l.b16 %v2075
          %v2160 = vunpack.c.h.b16 %v2075
          %v2161 = vunpack.c.l.b16 %v2076
          %v2162 = vunpack.c.h.b16 %v2076
          %v2163 = vunpack.c.l.b16 %v2077
          %v2164 = vunpack.c.h.b16 %v2077
          %v2165 = vunpack.c.l.b16 %v2078
          %v2166 = vunpack.c.h.b16 %v2078
          %v2167 = vunpack.c.l.b16 %v2079
          %v2168 = vunpack.c.h.b16 %v2079
          %v2169 = vunpack.c.l.b16 %v2080
          %v2170 = vunpack.c.h.b16 %v2080
          %v2171 = vunpack.c.l.b16 %v2081
          %v2172 = vunpack.c.h.b16 %v2081
          %v2173 = vunpack.c.l.b16 %v2082
          %v2174 = vunpack.c.h.b16 %v2082
          %v2175 = vunpack.c.l.b16 %v2083
          %v2176 = vunpack.c.h.b16 %v2083
          %v2177 = vunpack.c.l.b16 %v2084
          %v2178 = vunpack.c.h.b16 %v2084
          %v2179 = vunpack.c.l.b16 %v2085
          %v2180 = vunpack.c.h.b16 %v2085
          %v2181 = vunpack.c.l.b16 %v2086
          %v2182 = vunpack.c.h.b16 %v2086
          %v2183 = vunpack.c.l.b16 %v2087
          %v2184 = vunpack.c.h.b16 %v2087
          %v2185 = vunpack.c.l.b16 %v2088
          %v2186 = vunpack.c.h.b16 %v2088
          %v2187 = vunpack.c.l.b16 %v2089
          %v2188 = vunpack.c.h.b16 %v2089
          %v2189 = vunpack.c.l.b16 %v2090
          %v2190 = vunpack.c.h.b16 %v2090
          %v2191 = vunpack.c.l.b16 %v2091
          %v2192 = vunpack.c.h.b16 %v2091
          %v2193 = vunpack.c.l.b16 %v2092
          %v2194 = vunpack.c.h.b16 %v2092
          %v2195 = vpack.c.b16 %v2133, %v2131
          %v2196 = vpack.c.b16 %v2134, %v2132
          %v2197 = vpack.c.b16 %v2137, %v2135
          %v2198 = vpack.c.b16 %v2138, %v2136
          %v2199 = vpack.c.b16 %v2141, %v2139
          %v2200 = vpack.c.b16 %v2142, %v2140
          %v2201 = vpack.c.b16 %v2145, %v2143
          %v2202 = vpack.c.b16 %v2146, %v2144
          %v2203 = vpack.c.b16 %v2149, %v2147
          %v2204 = vpack.c.b16 %v2150, %v2148
          %v2205 = vpack.c.b16 %v2153, %v2151
          %v2206 = vpack.c.b16 %v2154, %v2152
          %v2207 = vpack.c.b16 %v2157, %v2155
          %v2208 = vpack.c.b16 %v2158, %v2156
          %v2209 = vpack.c.b16 %v2161, %v2159
          %v2210 = vpack.c.b16 %v2162, %v2160
          %v2211 = vpack.c.b16 %v2165, %v2163
          %v2212 = vpack.c.b16 %v2166, %v2164
          %v2213 = vpack.c.b16 %v2169, %v2167
          %v2214 = vpack.c.b16 %v2170, %v2168
          %v2215 = vpack.c.b16 %v2173, %v2171
          %v2216 = vpack.c.b16 %v2174, %v2172
          %v2217 = vpack.c.b16 %v2177, %v2175
          %v2218 = vpack.c.b16 %v2178, %v2176
          %v2219 = vpack.c.b16 %v2181, %v2179
          %v2220 = vpack.c.b16 %v2182, %v2180
          %v2221 = vpack.c.b16 %v2185, %v2183
          %v2222 = vpack.c.b16 %v2186, %v2184
          %v2223 = vpack.c.b16 %v2189, %v2187
          %v2224 = vpack.c.b16 %v2190, %v2188
          %v2225 = vpack.c.b16 %v2193, %v2191
          %v2226 = vpack.c.b16 %v2194, %v2192
          %2259 = vmatpush.bf16.msra.mxu0 %v2209
          %2260 = vmatpush.bf16.msra.mxu0 %v2207
          %2261 = vmatpush.bf16.msra.mxu0 %v2205
          %2262 = vmatpush.bf16.msra.mxu0 %v2203
          %2263 = vmatpush.bf16.msra.mxu0 %v2201
          %2264 = vmatpush.bf16.msra.mxu0 %v2199
          %2265 = vmatpush.bf16.msra.mxu0 %v2197
          %2266 = vmatpush.bf16.msra.mxu0 %v2195
          %2267 = vmatmul.bf16.gmra.mxu0 %v2059
          %v2268 = vpop.f32.mrf.mxu0
          %v2269 = vadd.f32 %v2095, %v2268
          %v2270 = vpop.f32.mrf.mxu0
          %2271 = vdwg.mxu0
          %2272 = vmatpush.bf16.msra.mxu0 %v2225
          %2273 = vmatpush.bf16.msra.mxu0 %v2223
          %2274 = vmatpush.bf16.msra.mxu0 %v2221
          %2275 = vmatpush.bf16.msra.mxu0 %v2219
          %2276 = vmatpush.bf16.msra.mxu0 %v2217
          %2277 = vmatpush.bf16.msra.mxu0 %v2215
          %2278 = vmatpush.bf16.msra.mxu0 %v2213
          %2279 = vmatpush.bf16.msra.mxu0 %v2211
          %2280 = vmatmul.bf16.gmra.mxu0 %v2060
          %v2281 = vpop.f32.mrf.mxu0
          %v2282 = vadd.f32 %v2269, %v2281
          %v2283 = vpop.f32.mrf.mxu0
          %2284 = vdwg.mxu0
          %2285 = vmatpush.bf16.msra.mxu0 %v2210
          %2286 = vmatpush.bf16.msra.mxu0 %v2208
          %2287 = vmatpush.bf16.msra.mxu0 %v2206
          %2288 = vmatpush.bf16.msra.mxu0 %v2204
          %2289 = vmatpush.bf16.msra.mxu0 %v2202
          %2290 = vmatpush.bf16.msra.mxu0 %v2200
          %2291 = vmatpush.bf16.msra.mxu0 %v2198
          %2292 = vmatpush.bf16.msra.mxu0 %v2196
          %2293 = vmatmul.bf16.gmra.mxu0 %v2059
          %v2294 = vpop.f32.mrf.mxu0
          %v2295 = vadd.f32 %v2096, %v2294
          %v2296 = vpop.f32.mrf.mxu0
          %2297 = vdwg.mxu0
          %2298 = vmatpush.bf16.msra.mxu0 %v2226
          %2299 = vmatpush.bf16.msra.mxu0 %v2224
          %2300 = vmatpush.bf16.msra.mxu0 %v2222
          %2301 = vmatpush.bf16.msra.mxu0 %v2220
          %2302 = vmatpush.bf16.msra.mxu0 %v2218
          %2303 = vmatpush.bf16.msra.mxu0 %v2216
          %2304 = vmatpush.bf16.msra.mxu0 %v2214
          %2305 = vmatpush.bf16.msra.mxu0 %v2212
          %2306 = vmatmul.bf16.gmra.mxu0 %v2060
          %v2307 = vpop.f32.mrf.mxu0
          %v2308 = vadd.f32 %v2295, %v2307
          %v2309 = vpop.f32.mrf.mxu0
          %2310 = vdwg.mxu0
          %2311 = vst [vmem:[%s12] sm:$0xff] %v2282
          %2312 = vst [vmem:[%s12 + $0x8] sm:$0xff] %v2308
        $region76: #{hkl_forward.1} parent=63 // pred_fallthru
          _
        // Predicated region
        $region77: #{hkl_forward.1} parent=63 // pred_check
          %p2313 = pneg %p281
        $region78: #{hkl_forward.1} parent=63 // pred_check_branch
          %2315 = sbr.rel (%p2313) target = $region80
        $region79: #{hkl_forward.1} parent=63 // pred_region
          _
        $region80: #{hkl_forward.1} parent=63 // pred_fallthru
          _
        // Predicated region
        $region81: #{hkl_forward.1} parent=63 // pred_check
          %p2316 = pneg %p281
        $region82: #{hkl_forward.1} parent=63 // pred_check_branch
          %2318 = sbr.rel (%p2316) target = $region84
        $region83: #{hkl_forward.1} parent=63 // pred_region
          _
        $region84: #{hkl_forward.1} parent=63 // pred_fallthru
          _
      $region64: #{hkl_forward.1} parent=5 // pred_fallthru
        _
      %p2319 = scmp.le.s32.totalorder 2, %s27
      // Predicated region
      $region85: #{hkl_forward.1} parent=5 // pred_check
        %p2320 = pneg %p2319
      $region86: #{hkl_forward.1} parent=5 // pred_check_branch
        %2322 = sbr.rel (%p2320) target = $region88
      $region87: #{hkl_forward.1} parent=5 // pred_region
        %s2323 = ssub.s32 %s27, 2
      $region88: #{hkl_forward.1} parent=5 // pred_fallthru
        _
    $region6: #{hkl_forward.1} parent=1 // loop_footer
      %s31 = sadd.s32 1, %s27
    $region7: #{hkl_forward.1} parent=1 // loop_footer_branch
      %26 = sbr.rel target = $region3
    $region8: #{hkl_forward.1} parent=1 // loop_exit
      _
    %2324 = vsyncpa [#allocation7], 1
    %s2325 = scalar_lea.sflag [#allocation7], 1
    %2326 = vsyncpa %s2325, 1

</llo_original>
